<compile_context>
chip_gen: v7x
topology: tpu7x:2x2x1
jax: 0.10.0
libtpu: 0.0.40
codegen_flags: <defaults>
</compile_context>

<pallas_src>
import functools

import jax
import jax.numpy as jnp
import numpy as np
from jax import lax
from jax.experimental import pallas as pl
from jax.experimental.pallas import tpu as pltpu

NUM_CLASSES = 2                     # cat, dog
HIDDEN = 128                        # decoder hidden width
FEAT_DIM = 384                      # DinoV2 ViT-S/14 feature dim
PATCH_GRID = 16                     # 256 patch tokens = 16 x 16
N_TOKENS = PATCH_GRID * PATCH_GRID  # 256
PATCH_STRIDE = 14.0                 # 224 / 16 px per patch
LEVEL_FACTORS = (1, 2, 4)           # token-grid downsample factor per FPN level
USE_CENTERNESS = True
HEAD_OUT = NUM_CLASSES + 4 + 1      # 7 real columns: cls | (l,t,r,b) | centerness
HEAD_PAD = 128                      # lane-dense padded head width


# ------------------------------ fused kernel ------------------------------- #

def _decoder_kernel(x_ref, wp_ref, bp_ref, wh_ref, bh_ref, p2_ref, p4_ref,
                    o0_ref, o1_ref, o2_ref, *, strides):
    """One grid step = one image: tower + head + 3-level pool/epilogue."""
    # Shared tower: relu(x @ Wp + bp)   -> f32 [256, 128], VMEM resident value.
    h = jnp.dot(x_ref[...], wp_ref[...], preferred_element_type=jnp.float32)
    h = jnp.maximum(h + bp_ref[...], 0.0)

    # Fused head matmul on the finest level (pre-epilogue), 128-lane padded.
    raw0 = jnp.dot(h.astype(jnp.bfloat16), wh_ref[...],
                   preferred_element_type=jnp.float32) + bh_ref[...]

    # avg-pool(head(h)) == head(avg-pool(h)): pool the pre-epilogue result with
    # constant pooling matrices (2x2 and 4x4 token averaging) on the MXU.
    raw1 = jnp.dot(p2_ref[...], raw0, preferred_element_type=jnp.float32)
    raw2 = jnp.dot(p4_ref[...], raw0, preferred_element_type=jnp.float32)

    # Single constant column mask (one vreg), reused by all three levels.
    col = lax.broadcasted_iota(jnp.int32, (1, HEAD_PAD), 1)
    is_bbox = (col >= NUM_CLASSES) & (col < NUM_CLASSES + 4)

    def epilogue(raw, stride):
        # cls / centerness columns stay raw logits; bbox columns get exp()*stride.
        return jnp.where(is_bbox, jnp.exp(raw) * stride, raw)

    o0_ref[...] = epilogue(raw0, strides[0])
    o1_ref[...] = epilogue(raw1, strides[1])
    o2_ref[...] = epilogue(raw2, strides[2])


def fused_decoder(x_bf16, w_proj, b_proj, w_head, b_head, p2, p4):
    """[B, 256, 384] bf16 -> 3 lane-dense per-level raw outputs [B, Nl, 128]."""
    B = x_bf16.shape[0]
    n1 = (PATCH_GRID // 2) ** 2   # 64
    n2 = (PATCH_GRID // 4) ** 2   # 16
    strides = tuple(float(PATCH_STRIDE * f) for f in LEVEL_FACTORS)
    kernel = functools.partial(_decoder_kernel, strides=strides)

    return pl.pallas_call(
        kernel,
        out_shape=(
            jax.ShapeDtypeStruct((B, N_TOKENS, HEAD_PAD), jnp.float32),
            jax.ShapeDtypeStruct((B, n1, HEAD_PAD), jnp.float32),
            jax.ShapeDtypeStruct((B, n2, HEAD_PAD), jnp.float32),
        ),
        grid=(B,),
        in_specs=[
            pl.BlockSpec((None, N_TOKENS, FEAT_DIM), lambda b: (b, 0, 0)),  # x
            pl.BlockSpec((FEAT_DIM, HIDDEN), lambda b: (0, 0)),             # w_proj
            pl.BlockSpec((1, HIDDEN), lambda b: (0, 0)),                    # b_proj
            pl.BlockSpec((HIDDEN, HEAD_PAD), lambda b: (0, 0)),             # w_head (padded)
            pl.BlockSpec((1, HEAD_PAD), lambda b: (0, 0)),                  # b_head (padded)
            pl.BlockSpec((n1, N_TOKENS), lambda b: (0, 0)),                 # 2x2 pool matrix
            pl.BlockSpec((n2, N_TOKENS), lambda b: (0, 0)),                 # 4x4 pool matrix
        ],
        out_specs=(
            pl.BlockSpec((None, N_TOKENS, HEAD_PAD), lambda b: (b, 0, 0)),
            pl.BlockSpec((None, n1, HEAD_PAD), lambda b: (b, 0, 0)),
            pl.BlockSpec((None, n2, HEAD_PAD), lambda b: (b, 0, 0)),
        ),
        compiler_params=pltpu.CompilerParams(
            dimension_semantics=("parallel",)),  # B=2 -> both TCs on v7x
    )(x_bf16, w_proj, b_proj, w_head, b_head, p2, p4)


# --------------------------------- glue ------------------------------------ #

def pooling_matrix(factor):
    """Constant [ (16/f)^2, 256 ] averaging matrix over the 16x16 token grid."""
    g = PATCH_GRID
    n = g // factor
    idx = jnp.arange(g * g)
    y, x = idx // g, idx % g
    r = (y // factor) * n + (x // factor)            # pooled-row index per fine token
    P = (r[None, :] == jnp.arange(n * n)[:, None]).astype(jnp.float32)
    return P / float(factor * factor)                # rows sum to 1 (average)


def anchor_points(factor):
    n = PATCH_GRID // factor
    step = PATCH_STRIDE * factor
    coords = (jnp.arange(n, dtype=jnp.float32) + 0.5) * step
    yy, xx = jnp.meshgrid(coords, coords, indexing="ij")
    return jnp.stack([xx.reshape(-1), yy.reshape(-1)], axis=-1)  # [n*n, 2] (x, y)


def init_params(key):
    k1, k2, k3 = jax.random.split(key, 3)
    w_head_real = jax.random.normal(k2, (HIDDEN, HEAD_OUT), jnp.float32) * 0.02
    b_head_real = jax.random.normal(k3, (1, HEAD_OUT), jnp.float32) * 0.01
    # Zero-pad the head to 128 lanes so kernel stores are lane-dense.
    w_head = jnp.zeros((HIDDEN, HEAD_PAD), jnp.float32).at[:, :HEAD_OUT].set(w_head_real)
    b_head = jnp.zeros((1, HEAD_PAD), jnp.float32).at[:, :HEAD_OUT].set(b_head_real)
    return {
        "w_proj": (jax.random.normal(k1, (FEAT_DIM, HIDDEN), jnp.float32) * 0.02
                   ).astype(jnp.bfloat16),
        "b_proj": jnp.zeros((1, HIDDEN), jnp.float32),
        "w_head": w_head.astype(jnp.bfloat16),
        "b_head": b_head,
    }


def cat_dog_detector_forward(patch_features, params):
    """Forward: pre-computed features [B, 256, 384] -> list of per-level dicts."""
    B, N, D = patch_features.shape
    assert N == N_TOKENS and D == FEAT_DIM
    x = patch_features.astype(jnp.bfloat16)          # halve HBM->VMEM DMA bytes
    p2 = pooling_matrix(2)
    p4 = pooling_matrix(4)

    raws = fused_decoder(x, params["w_proj"], params["b_proj"],
                         params["w_head"], params["b_head"], p2, p4)

    outputs = []
    for factor, raw in zip(LEVEL_FACTORS, raws):
        cls = jnp.transpose(raw[:, :, :NUM_CLASSES], (0, 2, 1))                # [B, C, Nl]
        bbox = jnp.transpose(raw[:, :, NUM_CLASSES:NUM_CLASSES + 4], (0, 2, 1))  # [B, 4, Nl]
        level = {
            "cls_scores": cls,
            "bbox_preds": bbox,
            "anchor_points": anchor_points(factor),
        }
        if USE_CENTERNESS:
            level["centerness"] = jnp.transpose(
                raw[:, :, NUM_CLASSES + 4:NUM_CLASSES + 5], (0, 2, 1))         # [B, 1, Nl]
        outputs.append(level)
    return outputs


# ------------------------------ pure-JAX ref -------------------------------- #

def reference_forward(patch_features, params):
    x = patch_features.astype(jnp.bfloat16)
    h = jnp.maximum(
        jnp.dot(x, params["w_proj"], preferred_element_type=jnp.float32)
        + params["b_proj"], 0.0)
    raw0 = (jnp.dot(h.astype(jnp.bfloat16), params["w_head"],
                    preferred_element_type=jnp.float32) + params["b_head"])
    outs = []
    for factor in LEVEL_FACTORS:
        if factor == 1:
            raw = raw0
        else:
            P = pooling_matrix(factor)
            raw = jnp.einsum("pn,bnc->bpc", P, raw0)
        stride = PATCH_STRIDE * factor
        cols = jnp.arange(HEAD_PAD)
        is_bbox = (cols >= NUM_CLASSES) & (cols < NUM_CLASSES + 4)
        raw = jnp.where(is_bbox[None, None, :], jnp.exp(raw) * stride, raw)
        outs.append({
            "cls_scores": jnp.transpose(raw[:, :, :NUM_CLASSES], (0, 2, 1)),
            "bbox_preds": jnp.transpose(raw[:, :, NUM_CLASSES:NUM_CLASSES + 4], (0, 2, 1)),
            "centerness": jnp.transpose(raw[:, :, NUM_CLASSES + 4:NUM_CLASSES + 5], (0, 2, 1)),
        })
    return outs


if __name__ == "__main__":
    key = jax.random.PRNGKey(0)
    k_in, k_par = jax.random.split(key)

    # Pre-computed DinoV2 patch features, as documented: [B, 256, 384]
    B = 2
    patch_features = jax.random.normal(k_in, (B, N_TOKENS, FEAT_DIM), jnp.float32)
    params = init_params(k_par)

    outputs = cat_dog_detector_forward(patch_features, params)
    outputs = jax.block_until_ready(outputs)

    # shape / positivity sanity checks
    for factor, lvl in zip(LEVEL_FACTORS, outputs):
        n = (PATCH_GRID // factor) ** 2
        assert lvl["cls_scores"].shape == (B, NUM_CLASSES, n)
        assert lvl["bbox_preds"].shape == (B, 4, n)
        assert lvl["centerness"].shape == (B, 1, n)
        assert lvl["anchor_points"].shape == (n, 2)
        assert bool(jnp.all(lvl["bbox_preds"] > 0.0))  # exp()*stride > 0

    # numerical check against pure-JAX reference (same bf16/f32 recipe)
    refs = reference_forward(patch_features, params)
    for lvl, ref in zip(outputs, refs):
        for k in ("cls_scores", "bbox_preds", "centerness"):
            np.testing.assert_allclose(np.asarray(lvl[k]), np.asarray(ref[k]),
                                       rtol=1e-1, atol=5e-2)

    print("KERNEL_OK")
</pallas_src>

<mosaic_0001>
module attributes {stable_mosaic.version = 11 : i64} {
  func.func @_decoder_kernel(%arg0: i32, %arg1: memref<1x256x384xbf16, #tpu.memory_space<vmem>>, %arg2: memref<384x128xbf16, #tpu.memory_space<vmem>>, %arg3: memref<1x128xf32, #tpu.memory_space<vmem>>, %arg4: memref<128x128xbf16, #tpu.memory_space<vmem>>, %arg5: memref<1x128xf32, #tpu.memory_space<vmem>>, %arg6: memref<64x256xf32, #tpu.memory_space<vmem>>, %arg7: memref<16x256xf32, #tpu.memory_space<vmem>>, %arg8: memref<1x256x128xf32, #tpu.memory_space<vmem>>, %arg9: memref<1x64x128xf32, #tpu.memory_space<vmem>>, %arg10: memref<1x16x128xf32, #tpu.memory_space<vmem>>) attributes {dimension_semantics = [#tpu.dimension_semantics<parallel>], iteration_bounds = array<i64: 2>, scalar_prefetch = 0 : i64, scratch_operands = 0 : i64, tpu.core_type = #tpu.core_type<tc>, window_params = [{transform_indices = @transform_0, window_bounds = array<i64: 1, 256, 384>}, {pipeline_mode = #tpu.pipeline_mode<synchronous>, transform_indices = @transform_1, window_bounds = array<i64: 384, 128>}, {pipeline_mode = #tpu.pipeline_mode<synchronous>, transform_indices = @transform_2, window_bounds = array<i64: 1, 128>}, {pipeline_mode = #tpu.pipeline_mode<synchronous>, transform_indices = @transform_3, window_bounds = array<i64: 128, 128>}, {pipeline_mode = #tpu.pipeline_mode<synchronous>, transform_indices = @transform_4, window_bounds = array<i64: 1, 128>}, {pipeline_mode = #tpu.pipeline_mode<synchronous>, transform_indices = @transform_5, window_bounds = array<i64: 64, 256>}, {pipeline_mode = #tpu.pipeline_mode<synchronous>, transform_indices = @transform_6, window_bounds = array<i64: 16, 256>}, {transform_indices = @transform_7, window_bounds = array<i64: 1, 256, 128>}, {transform_indices = @transform_8, window_bounds = array<i64: 1, 64, 128>}, {transform_indices = @transform_9, window_bounds = array<i64: 1, 16, 128>}]} {
    %c0 = arith.constant 0 : index
    %c0_0 = arith.constant 0 : index
    %c0_1 = arith.constant 0 : index
    %0 = vector.load %arg1[%c0, %c0_0, %c0_1] : memref<1x256x384xbf16, #tpu.memory_space<vmem>>, vector<1x256x384xbf16>
    %1 = vector.shape_cast %0 : vector<1x256x384xbf16> to vector<256x384xbf16>
    %c0_2 = arith.constant 0 : index
    %c0_3 = arith.constant 0 : index
    %2 = vector.load %arg2[%c0_2, %c0_3] : memref<384x128xbf16, #tpu.memory_space<vmem>>, vector<384x128xbf16>
    %cst = arith.constant dense<0.000000e+00> : vector<256x128xf32>
    %3 = tpu.matmul %1, %2, %cst {dimension_numbers = #tpu.dot_dimension_numbers<[1], [0], [0], [1], [0, 0, 1, 1], [], []>} : vector<256x384xbf16>, vector<384x128xbf16>, vector<256x128xf32> -> vector<256x128xf32>
    %c0_4 = arith.constant 0 : index
    %c0_5 = arith.constant 0 : index
    %4 = vector.load %arg3[%c0_4, %c0_5] : memref<1x128xf32, #tpu.memory_space<vmem>>, vector<1x128xf32>
    %5 = vector.broadcast %4 : vector<1x128xf32> to vector<256x128xf32>
    %6 = arith.addf %3, %5 : vector<256x128xf32>
    %cst_6 = arith.constant 0.000000e+00 : f32
    %7 = vector.broadcast %cst_6 : f32 to vector<256x128xf32>
    %8 = arith.maximumf %6, %7 : vector<256x128xf32>
    %9 = arith.truncf %8 : vector<256x128xf32> to vector<256x128xbf16>
    %c0_7 = arith.constant 0 : index
    %c0_8 = arith.constant 0 : index
    %10 = vector.load %arg4[%c0_7, %c0_8] : memref<128x128xbf16, #tpu.memory_space<vmem>>, vector<128x128xbf16>
    %cst_9 = arith.constant dense<0.000000e+00> : vector<256x128xf32>
    %11 = tpu.matmul %9, %10, %cst_9 {dimension_numbers = #tpu.dot_dimension_numbers<[1], [0], [0], [1], [0, 0, 1, 1], [], []>} : vector<256x128xbf16>, vector<128x128xbf16>, vector<256x128xf32> -> vector<256x128xf32>
    %c0_10 = arith.constant 0 : index
    %c0_11 = arith.constant 0 : index
    %12 = vector.load %arg5[%c0_10, %c0_11] : memref<1x128xf32, #tpu.memory_space<vmem>>, vector<1x128xf32>
    %13 = vector.broadcast %12 : vector<1x128xf32> to vector<256x128xf32>
    %14 = arith.addf %11, %13 : vector<256x128xf32>
    %c0_12 = arith.constant 0 : index
    %c0_13 = arith.constant 0 : index
    %15 = vector.load %arg6[%c0_12, %c0_13] : memref<64x256xf32, #tpu.memory_space<vmem>>, vector<64x256xf32>
    %cst_14 = arith.constant dense<0.000000e+00> : vector<64x128xf32>
    %16 = tpu.matmul %15, %14, %cst_14 {dimension_numbers = #tpu.dot_dimension_numbers<[1], [0], [0], [1], [0, 0, 1, 1], [], []>} : vector<64x256xf32>, vector<256x128xf32>, vector<64x128xf32> -> vector<64x128xf32>
    %c0_15 = arith.constant 0 : index
    %c0_16 = arith.constant 0 : index
    %17 = vector.load %arg7[%c0_15, %c0_16] : memref<16x256xf32, #tpu.memory_space<vmem>>, vector<16x256xf32>
    %cst_17 = arith.constant dense<0.000000e+00> : vector<16x128xf32>
    %18 = tpu.matmul %17, %14, %cst_17 {dimension_numbers = #tpu.dot_dimension_numbers<[1], [0], [0], [1], [0, 0, 1, 1], [], []>} : vector<16x256xf32>, vector<256x128xf32>, vector<16x128xf32> -> vector<16x128xf32>
    %19 = tpu.iota {dimensions = array<i32: 1>} : vector<1x128xi32>
    %c2_i32 = arith.constant 2 : i32
    %20 = vector.broadcast %c2_i32 : i32 to vector<1x128xi32>
    %21 = arith.cmpi sge, %19, %20 : vector<1x128xi32>
    %c6_i32 = arith.constant 6 : i32
    %22 = vector.broadcast %c6_i32 : i32 to vector<1x128xi32>
    %23 = arith.cmpi slt, %19, %22 : vector<1x128xi32>
    %24 = arith.andi %21, %23 : vector<1x128xi1>
    %25 = math.exp %14 : vector<256x128xf32>
    %cst_18 = arith.constant 1.400000e+01 : f32
    %26 = vector.broadcast %cst_18 : f32 to vector<256x128xf32>
    %27 = arith.mulf %25, %26 : vector<256x128xf32>
    %28 = vector.shape_cast %24 : vector<1x128xi1> to vector<1x128xi1>
    %29 = vector.broadcast %28 : vector<1x128xi1> to vector<256x128xi1>
    %30 = arith.select %29, %27, %14 : vector<256x128xi1>, vector<256x128xf32>
    %c0_19 = arith.constant 0 : index
    %c0_20 = arith.constant 0 : index
    %c0_21 = arith.constant 0 : index
    %31 = vector.load %arg8[%c0_19, %c0_20, %c0_21] : memref<1x256x128xf32, #tpu.memory_space<vmem>>, vector<1x256x128xf32>
    %32 = vector.shape_cast %31 : vector<1x256x128xf32> to vector<256x128xf32>
    %33 = vector.shape_cast %30 : vector<256x128xf32> to vector<1x256x128xf32>
    tpu.vector_store %arg8[%c0_19, %c0_20, %c0_21], %33 {strides = array<i32>} : memref<1x256x128xf32, #tpu.memory_space<vmem>>, vector<1x256x128xf32>,
    %34 = math.exp %16 : vector<64x128xf32>
    %cst_22 = arith.constant 2.800000e+01 : f32
    %35 = vector.broadcast %cst_22 : f32 to vector<64x128xf32>
    %36 = arith.mulf %34, %35 : vector<64x128xf32>
    %37 = vector.shape_cast %24 : vector<1x128xi1> to vector<1x128xi1>
    %38 = vector.broadcast %37 : vector<1x128xi1> to vector<64x128xi1>
    %39 = arith.select %38, %36, %16 : vector<64x128xi1>, vector<64x128xf32>
    %c0_23 = arith.constant 0 : index
    %c0_24 = arith.constant 0 : index
    %c0_25 = arith.constant 0 : index
    %40 = vector.load %arg9[%c0_23, %c0_24, %c0_25] : memref<1x64x128xf32, #tpu.memory_space<vmem>>, vector<1x64x128xf32>
    %41 = vector.shape_cast %40 : vector<1x64x128xf32> to vector<64x128xf32>
    %42 = vector.shape_cast %39 : vector<64x128xf32> to vector<1x64x128xf32>
    tpu.vector_store %arg9[%c0_23, %c0_24, %c0_25], %42 {strides = array<i32>} : memref<1x64x128xf32, #tpu.memory_space<vmem>>, vector<1x64x128xf32>,
    %43 = math.exp %18 : vector<16x128xf32>
    %cst_26 = arith.constant 5.600000e+01 : f32
    %44 = vector.broadcast %cst_26 : f32 to vector<16x128xf32>
    %45 = arith.mulf %43, %44 : vector<16x128xf32>
    %46 = vector.shape_cast %24 : vector<1x128xi1> to vector<1x128xi1>
    %47 = vector.broadcast %46 : vector<1x128xi1> to vector<16x128xi1>
    %48 = arith.select %47, %45, %18 : vector<16x128xi1>, vector<16x128xf32>
    %c0_27 = arith.constant 0 : index
    %c0_28 = arith.constant 0 : index
    %c0_29 = arith.constant 0 : index
    %49 = vector.load %arg10[%c0_27, %c0_28, %c0_29] : memref<1x16x128xf32, #tpu.memory_space<vmem>>, vector<1x16x128xf32>
    %50 = vector.shape_cast %49 : vector<1x16x128xf32> to vector<16x128xf32>
    %51 = vector.shape_cast %48 : vector<16x128xf32> to vector<1x16x128xf32>
    tpu.vector_store %arg10[%c0_27, %c0_28, %c0_29], %51 {strides = array<i32>} : memref<1x16x128xf32, #tpu.memory_space<vmem>>, vector<1x16x128xf32>,
    return
  }
  func.func @transform_0(%arg0: i32) -> (i32, i32, i32) {
    %c0_i32 = arith.constant 0 : i32
    %c0_i32_0 = arith.constant 0 : i32
    %c0_i32_1 = arith.constant 0 : i32
    return %arg0, %c0_i32, %c0_i32_0 : i32, i32, i32
  }
  func.func @transform_1(%arg0: i32) -> (i32, i32) {
    %c0_i32 = arith.constant 0 : i32
    %c0_i32_0 = arith.constant 0 : i32
    %c0_i32_1 = arith.constant 0 : i32
    return %c0_i32, %c0_i32_0 : i32, i32
  }
  func.func @transform_2(%arg0: i32) -> (i32, i32) {
    %c0_i32 = arith.constant 0 : i32
    %c0_i32_0 = arith.constant 0 : i32
    %c0_i32_1 = arith.constant 0 : i32
    return %c0_i32, %c0_i32_0 : i32, i32
  }
  func.func @transform_3(%arg0: i32) -> (i32, i32) {
    %c0_i32 = arith.constant 0 : i32
    %c0_i32_0 = arith.constant 0 : i32
    %c0_i32_1 = arith.constant 0 : i32
    return %c0_i32, %c0_i32_0 : i32, i32
  }
  func.func @transform_4(%arg0: i32) -> (i32, i32) {
    %c0_i32 = arith.constant 0 : i32
    %c0_i32_0 = arith.constant 0 : i32
    %c0_i32_1 = arith.constant 0 : i32
    return %c0_i32, %c0_i32_0 : i32, i32
  }
  func.func @transform_5(%arg0: i32) -> (i32, i32) {
    %c0_i32 = arith.constant 0 : i32
    %c0_i32_0 = arith.constant 0 : i32
    %c0_i32_1 = arith.constant 0 : i32
    return %c0_i32, %c0_i32_0 : i32, i32
  }
  func.func @transform_6(%arg0: i32) -> (i32, i32) {
    %c0_i32 = arith.constant 0 : i32
    %c0_i32_0 = arith.constant 0 : i32
    %c0_i32_1 = arith.constant 0 : i32
    return %c0_i32, %c0_i32_0 : i32, i32
  }
  func.func @transform_7(%arg0: i32) -> (i32, i32, i32) {
    %c0_i32 = arith.constant 0 : i32
    %c0_i32_0 = arith.constant 0 : i32
    %c0_i32_1 = arith.constant 0 : i32
    return %arg0, %c0_i32, %c0_i32_0 : i32, i32, i32
  }
  func.func @transform_8(%arg0: i32) -> (i32, i32, i32) {
    %c0_i32 = arith.constant 0 : i32
    %c0_i32_0 = arith.constant 0 : i32
    %c0_i32_1 = arith.constant 0 : i32
    return %arg0, %c0_i32, %c0_i32_0 : i32, i32, i32
  }
  func.func @transform_9(%arg0: i32) -> (i32, i32, i32) {
    %c0_i32 = arith.constant 0 : i32
    %c0_i32_0 = arith.constant 0 : i32
    %c0_i32_1 = arith.constant 0 : i32
    return %arg0, %c0_i32, %c0_i32_0 : i32, i32, i32
  }
}

</mosaic_0001>

<llo_original>
// kernel: tpu_custom_call.1
$region0: #{tpu_custom_call.1}
  #allocation0 [shape = 'u32[]', space=smem, size = 0x4, offset = 0x4, fixed_abs, tag = 'smem constant byte address 0x4 - core index']
  #allocation1 [shape = 'u32[144,128]{1,0:T(1,128)}', space=vmem, size = 0x12000, scoped, tag = 'internal scratch']
  %s0 = inlined_call_operand.hbm [shape: bf16[2,256,384], index: 0, kind: input, shape index: {}]
  %s1 = inlined_call_operand.hbm [shape: bf16[384,128], index: 1, kind: input, shape index: {}]
  %s2 = inlined_call_operand.vmem [shape: f32[1,128], index: 2, kind: input, shape index: {}]
  %s3 = inlined_call_operand.hbm [shape: bf16[128,128], index: 3, kind: input, shape index: {}]
  %s4 = inlined_call_operand.vmem [shape: f32[1,128], index: 4, kind: input, shape index: {}]
  %s5 = inlined_call_operand.hbm [shape: f32[64,256], index: 5, kind: input, shape index: {}]
  %s6 = inlined_call_operand.hbm [shape: f32[16,256], index: 6, kind: input, shape index: {}]
  %s7 = inlined_call_operand.hbm [shape: f32[2,256,128], index: 7, kind: output, shape index: {0}]
  %s8 = inlined_call_operand.hbm [shape: f32[2,64,128], index: 8, kind: output, shape index: {1}]
  %s9 = inlined_call_operand.hbm [shape: f32[2,16,128], index: 9, kind: output, shape index: {2}]
  %10 = xla_tuple %s7, %s8, %s9
  %s11 = sld [smem:[#allocation0]]
  $region97: #{tpu_custom_call.1} parent=0
    _
  %s13 = ssub.s32 1, %s11
  %s14 = scalar_select 0, %s13, %s11
  $region1: #{tpu_custom_call.1} parent=0
    #allocation2 [shape = 'u8[393216]{0}', space=vmem, size = 0x60000, scoped, tag = 'input window, operand 0']
    #allocation3 [shape = 's32[2]{0}', space=sflag, size = 0x8, scoped, tag = 'scoped memory for tpu_custom_call.1']
    #allocation4 [shape = 's32[2]{0}', space=sflag, size = 0x8, scoped, tag = 'scoped memory for tpu_custom_call.1']
    #allocation5 [shape = 'u8[98304]{0}', space=vmem, size = 0x18000, scoped, tag = 'input window, operand 1, single buffered']
    #allocation6 [shape = 's32[1]{0}', space=sflag, size = 0x4, scoped, tag = 'scoped memory for tpu_custom_call.1']
    #allocation7 [shape = 'u8[32768]{0}', space=vmem, size = 0x8000, scoped, tag = 'input window, operand 3, single buffered']
    #allocation8 [shape = 'u8[65536]{0}', space=vmem, size = 0x10000, scoped, tag = 'input window, operand 5, single buffered']
    #allocation9 [shape = 's32[1]{0}', space=sflag, size = 0x4, scoped, tag = 'scoped memory for tpu_custom_call.1']
    #allocation10 [shape = 'u8[16384]{0}', space=vmem, size = 0x4000, scoped, tag = 'input window, operand 6, single buffered']
    #allocation11 [shape = 'u8[262144]{0}', space=vmem, size = 0x40000, scoped, tag = 'output window, operand 0']
    #allocation12 [shape = 'u8[65536]{0}', space=vmem, size = 0x10000, scoped, tag = 'output window, operand 1']
    #allocation13 [shape = 's32[2]{0}', space=sflag, size = 0x8, scoped, tag = 'scoped memory for tpu_custom_call.1']
    #allocation14 [shape = 'u8[16384]{0}', space=vmem, size = 0x4000, scoped, tag = 'output window, operand 2']
    %15 = vsyncpa [#allocation3], 0
    %s16 = scalar_lea.sflag [#allocation3], 1
    %17 = vsyncpa %s16, 0
    %18 = vsyncpa [#allocation6], 0
    %19 = vsyncpa [#allocation9], 0
    %20 = vsyncpa [#allocation4], 0
    %s21 = scalar_lea.sflag [#allocation4], 1
    %22 = vsyncpa %s21, 0
    %23 = vsyncpa [#allocation13], 0
    %s24 = scalar_lea.sflag [#allocation13], 1
    %25 = vsyncpa %s24, 0
    loop: start=0, step=1, limit=4
    $region2: #{tpu_custom_call.1} parent=1 // loop_pre_header
      _
    $region3: #{tpu_custom_call.1} parent=1 // loop_header
      %s27 = sphi 0, %s31
      %p28 = scmp.ge.s32.totalorder %s27, 4
      %s37 = sphi 0, %s39
      %s40 = sphi 0, %s37
      %s41 = sphi 0, %s40
      %s57 = sphi 0, %s41
      %s61 = sphi 0, %s61
      %s63 = sphi 0, %s61
      %s64 = sphi 0, %s63
      %s78 = sphi 0, %s64
      %s82 = sphi 0, %s82
      %s84 = sphi 0, %s82
      %s85 = sphi 0, %s84
      %s99 = sphi 0, %s85
      %s103 = sphi 0, %s103
      %s105 = sphi 0, %s103
      %s106 = sphi 0, %s105
      %s120 = sphi 0, %s106
      %s124 = sphi 0, %s124
      %s126 = sphi 0, %s124
      %s127 = sphi 0, %s126
      %s141 = sphi 0, %s127
      %s145 = sphi 0, %s145
      %s147 = sphi 0, %s145
      %s148 = sphi 0, %s147
      %s162 = sphi 0, %s148
      %s166 = sphi 0, %s166
      %s168 = sphi 0, %s166
      %s169 = sphi 0, %s168
      %s183 = sphi 0, %s169
      %s189 = sphi 0, %s191
      %s192 = sphi 0, %s189
      %s193 = sphi 0, %s192
      %s209 = sphi 0, %s193
      %s215 = sphi 0, %s217
      %s218 = sphi 0, %s215
      %s219 = sphi 0, %s218
      %s235 = sphi 0, %s219
      %s241 = sphi 0, %s243
      %s244 = sphi 0, %s241
      %s245 = sphi 0, %s244
      %s261 = sphi 0, %s245
    $region4: #{tpu_custom_call.1} parent=1 // loop_header_branch
      %30 = sbr.rel (%p28) target = $region8
    $region5: #{tpu_custom_call.1} parent=1 // loop_body
      %s32 = ssub.s32 %s27, 1
      %s33 = ssub.s32 %s27, 2
      %s34 = sadd.s32 %s27, 1
      %s35 = ssub.s32 %s27, %s34
      %p36 = scmp.eq.s32.totalorder %s35, 0
      %s38 = sadd.s32 %s37, 1
      %s39 = scalar_select %p36, %s37, %s38
      %p42 = pneg %p36
      %p43 = scmp.eq.s32.totalorder %s27, 1
      %p44 = por %p42, %p43
      %p45 = scmp.ne.s32.totalorder %s37, %s40
      %p46 = scmp.eq.s32.totalorder %s27, 0
      %p47 = por %p45, %p46
      %p48 = scmp.ne.s32.totalorder %s37, %s40
      %p49 = scmp.eq.s32.totalorder %s32, 1
      %p50 = por %p48, %p49
      %p51 = scmp.ne.s32.totalorder %s40, %s41
      %p52 = scmp.eq.s32.totalorder %s32, 0
      %p53 = por %p51, %p52
      %p54 = scmp.ne.s32.totalorder %s40, %s41
      %p55 = scmp.eq.s32.totalorder %s33, 1
      %p56 = por %p54, %p55
      %p58 = scmp.ne.s32.totalorder %s41, %s57
      %p59 = scmp.eq.s32.totalorder %s33, 0
      %p60 = por %p58, %p59
      %s62 = sadd.s32 %s61, 1
      %p65 = scmp.eq.s32.totalorder %s27, 1
      %p66 = scmp.ne.s32.totalorder %s61, %s63
      %p67 = scmp.eq.s32.totalorder %s27, 0
      %p68 = por %p66, %p67
      %p69 = scmp.ne.s32.totalorder %s61, %s63
      %p70 = scmp.eq.s32.totalorder %s32, 1
      %p71 = por %p69, %p70
      %p72 = scmp.ne.s32.totalorder %s63, %s64
      %p73 = scmp.eq.s32.totalorder %s32, 0
      %p74 = por %p72, %p73
      %p75 = scmp.ne.s32.totalorder %s63, %s64
      %p76 = scmp.eq.s32.totalorder %s33, 1
      %p77 = por %p75, %p76
      %p79 = scmp.ne.s32.totalorder %s64, %s78
      %p80 = scmp.eq.s32.totalorder %s33, 0
      %p81 = por %p79, %p80
      %s83 = sadd.s32 %s82, 1
      %p86 = scmp.eq.s32.totalorder %s27, 1
      %p87 = scmp.ne.s32.totalorder %s82, %s84
      %p88 = scmp.eq.s32.totalorder %s27, 0
      %p89 = por %p87, %p88
      %p90 = scmp.ne.s32.totalorder %s82, %s84
      %p91 = scmp.eq.s32.totalorder %s32, 1
      %p92 = por %p90, %p91
      %p93 = scmp.ne.s32.totalorder %s84, %s85
      %p94 = scmp.eq.s32.totalorder %s32, 0
      %p95 = por %p93, %p94
      %p96 = scmp.ne.s32.totalorder %s84, %s85
      %p97 = scmp.eq.s32.totalorder %s33, 1
      %p98 = por %p96, %p97
      %p100 = scmp.ne.s32.totalorder %s85, %s99
      %p101 = scmp.eq.s32.totalorder %s33, 0
      %p102 = por %p100, %p101
      %s104 = sadd.s32 %s103, 1
      %p107 = scmp.eq.s32.totalorder %s27, 1
      %p108 = scmp.ne.s32.totalorder %s103, %s105
      %p109 = scmp.eq.s32.totalorder %s27, 0
      %p110 = por %p108, %p109
      %p111 = scmp.ne.s32.totalorder %s103, %s105
      %p112 = scmp.eq.s32.totalorder %s32, 1
      %p113 = por %p111, %p112
      %p114 = scmp.ne.s32.totalorder %s105, %s106
      %p115 = scmp.eq.s32.totalorder %s32, 0
      %p116 = por %p114, %p115
      %p117 = scmp.ne.s32.totalorder %s105, %s106
      %p118 = scmp.eq.s32.totalorder %s33, 1
      %p119 = por %p117, %p118
      %p121 = scmp.ne.s32.totalorder %s106, %s120
      %p122 = scmp.eq.s32.totalorder %s33, 0
      %p123 = por %p121, %p122
      %s125 = sadd.s32 %s124, 1
      %p128 = scmp.eq.s32.totalorder %s27, 1
      %p129 = scmp.ne.s32.totalorder %s124, %s126
      %p130 = scmp.eq.s32.totalorder %s27, 0
      %p131 = por %p129, %p130
      %p132 = scmp.ne.s32.totalorder %s124, %s126
      %p133 = scmp.eq.s32.totalorder %s32, 1
      %p134 = por %p132, %p133
      %p135 = scmp.ne.s32.totalorder %s126, %s127
      %p136 = scmp.eq.s32.totalorder %s32, 0
      %p137 = por %p135, %p136
      %p138 = scmp.ne.s32.totalorder %s126, %s127
      %p139 = scmp.eq.s32.totalorder %s33, 1
      %p140 = por %p138, %p139
      %p142 = scmp.ne.s32.totalorder %s127, %s141
      %p143 = scmp.eq.s32.totalorder %s33, 0
      %p144 = por %p142, %p143
      %s146 = sadd.s32 %s145, 1
      %p149 = scmp.eq.s32.totalorder %s27, 1
      %p150 = scmp.ne.s32.totalorder %s145, %s147
      %p151 = scmp.eq.s32.totalorder %s27, 0
      %p152 = por %p150, %p151
      %p153 = scmp.ne.s32.totalorder %s145, %s147
      %p154 = scmp.eq.s32.totalorder %s32, 1
      %p155 = por %p153, %p154
      %p156 = scmp.ne.s32.totalorder %s147, %s148
      %p157 = scmp.eq.s32.totalorder %s32, 0
      %p158 = por %p156, %p157
      %p159 = scmp.ne.s32.totalorder %s147, %s148
      %p160 = scmp.eq.s32.totalorder %s33, 1
      %p161 = por %p159, %p160
      %p163 = scmp.ne.s32.totalorder %s148, %s162
      %p164 = scmp.eq.s32.totalorder %s33, 0
      %p165 = por %p163, %p164
      %s167 = sadd.s32 %s166, 1
      %p170 = scmp.eq.s32.totalorder %s27, 1
      %p171 = scmp.ne.s32.totalorder %s166, %s168
      %p172 = scmp.eq.s32.totalorder %s27, 0
      %p173 = por %p171, %p172
      %p174 = scmp.ne.s32.totalorder %s166, %s168
      %p175 = scmp.eq.s32.totalorder %s32, 1
      %p176 = por %p174, %p175
      %p177 = scmp.ne.s32.totalorder %s168, %s169
      %p178 = scmp.eq.s32.totalorder %s32, 0
      %p179 = por %p177, %p178
      %p180 = scmp.ne.s32.totalorder %s168, %s169
      %p181 = scmp.eq.s32.totalorder %s33, 1
      %p182 = por %p180, %p181
      %p184 = scmp.ne.s32.totalorder %s169, %s183
      %p185 = scmp.eq.s32.totalorder %s33, 0
      %p186 = por %p184, %p185
      %s187 = ssub.s32 %s27, %s34
      %p188 = scmp.eq.s32.totalorder %s187, 0
      %s190 = sadd.s32 %s189, 1
      %s191 = scalar_select %p188, %s189, %s190
      %p194 = pneg %p188
      %p195 = scmp.eq.s32.totalorder %s27, 1
      %p196 = por %p194, %p195
      %p197 = scmp.ne.s32.totalorder %s189, %s192
      %p198 = scmp.eq.s32.totalorder %s27, 0
      %p199 = por %p197, %p198
      %p200 = scmp.ne.s32.totalorder %s189, %s192
      %p201 = scmp.eq.s32.totalorder %s32, 1
      %p202 = por %p200, %p201
      %p203 = scmp.ne.s32.totalorder %s192, %s193
      %p204 = scmp.eq.s32.totalorder %s32, 0
      %p205 = por %p203, %p204
      %p206 = scmp.ne.s32.totalorder %s192, %s193
      %p207 = scmp.eq.s32.totalorder %s33, 1
      %p208 = por %p206, %p207
      %p210 = scmp.ne.s32.totalorder %s193, %s209
      %p211 = scmp.eq.s32.totalorder %s33, 0
      %p212 = por %p210, %p211
      %s213 = ssub.s32 %s27, %s34
      %p214 = scmp.eq.s32.totalorder %s213, 0
      %s216 = sadd.s32 %s215, 1
      %s217 = scalar_select %p214, %s215, %s216
      %p220 = pneg %p214
      %p221 = scmp.eq.s32.totalorder %s27, 1
      %p222 = por %p220, %p221
      %p223 = scmp.ne.s32.totalorder %s215, %s218
      %p224 = scmp.eq.s32.totalorder %s27, 0
      %p225 = por %p223, %p224
      %p226 = scmp.ne.s32.totalorder %s215, %s218
      %p227 = scmp.eq.s32.totalorder %s32, 1
      %p228 = por %p226, %p227
      %p229 = scmp.ne.s32.totalorder %s218, %s219
      %p230 = scmp.eq.s32.totalorder %s32, 0
      %p231 = por %p229, %p230
      %p232 = scmp.ne.s32.totalorder %s218, %s219
      %p233 = scmp.eq.s32.totalorder %s33, 1
      %p234 = por %p232, %p233
      %p236 = scmp.ne.s32.totalorder %s219, %s235
      %p237 = scmp.eq.s32.totalorder %s33, 0
      %p238 = por %p236, %p237
      %s239 = ssub.s32 %s27, %s34
      %p240 = scmp.eq.s32.totalorder %s239, 0
      %s242 = sadd.s32 %s241, 1
      %s243 = scalar_select %p240, %s241, %s242
      %p246 = pneg %p240
      %p247 = scmp.eq.s32.totalorder %s27, 1
      %p248 = por %p246, %p247
      %p249 = scmp.ne.s32.totalorder %s241, %s244
      %p250 = scmp.eq.s32.totalorder %s27, 0
      %p251 = por %p249, %p250
      %p252 = scmp.ne.s32.totalorder %s241, %s244
      %p253 = scmp.eq.s32.totalorder %s32, 1
      %p254 = por %p252, %p253
      %p255 = scmp.ne.s32.totalorder %s244, %s245
      %p256 = scmp.eq.s32.totalorder %s32, 0
      %p257 = por %p255, %p256
      %p258 = scmp.ne.s32.totalorder %s244, %s245
      %p259 = scmp.eq.s32.totalorder %s33, 1
      %p260 = por %p258, %p259
      %p262 = scmp.ne.s32.totalorder %s245, %s261
      %p263 = scmp.eq.s32.totalorder %s33, 0
      %p264 = por %p262, %p263
      %p265 = scmp.le.s32.totalorder 1, %s27
      %p266 = scmp.lt.s32.totalorder %s27, 3
      %p267 = pnand %p265, %p266
      %p268 = pneg %p267
      // Predicated region
      $region9: #{tpu_custom_call.1} parent=5 // pred_check
        _
      $region10: #{tpu_custom_call.1} parent=5 // pred_check_branch
        %270 = sbr.rel (%p267) target = $region12
      $region11: #{tpu_custom_call.1} parent=5 // pred_region
        %s271 = ssub.s32 %s27, 1
        // Predicated region
        $region13: #{tpu_custom_call.1} parent=11 // pred_check
          %p272 = pneg %p74
        $region14: #{tpu_custom_call.1} parent=11 // pred_check_branch
          %274 = sbr.rel (%p272) target = $region16
        $region15: #{tpu_custom_call.1} parent=11 // pred_region
          %s276 = ssub.s32 3072, 3072
          %277 = vsyncadd [#allocation6], %s276
          %s278 = sshll.u32 [#allocation5], 4
          %s279 = int_to_ptr.vmem [resolvable:$true] %s278
          %284 = dma.hbm_to_vmem [thread:$0]  %s1, 3072, %s279, [#allocation6], 64, 64, 4
        $region16: #{tpu_custom_call.1} parent=11 // pred_fallthru
          _
        // Predicated region
        $region17: #{tpu_custom_call.1} parent=11 // pred_check
          %p285 = pneg %p95
        $region18: #{tpu_custom_call.1} parent=11 // pred_check_branch
          %287 = sbr.rel (%p285) target = $region20
        $region19: #{tpu_custom_call.1} parent=11 // pred_region
          _
        $region20: #{tpu_custom_call.1} parent=11 // pred_fallthru
          _
        // Predicated region
        $region21: #{tpu_custom_call.1} parent=11 // pred_check
          %p288 = pneg %p116
        $region22: #{tpu_custom_call.1} parent=11 // pred_check_branch
          %290 = sbr.rel (%p288) target = $region24
        $region23: #{tpu_custom_call.1} parent=11 // pred_region
          %s292 = ssub.s32 1024, 1024
          %293 = vsyncadd [#allocation6], %s292
          %s294 = sshll.u32 [#allocation7], 4
          %s295 = int_to_ptr.vmem [resolvable:$true] %s294
          %300 = dma.hbm_to_vmem [thread:$0]  %s3, 1024, %s295, [#allocation6], 64, 64, 4
        $region24: #{tpu_custom_call.1} parent=11 // pred_fallthru
          _
        // Predicated region
        $region25: #{tpu_custom_call.1} parent=11 // pred_check
          %p301 = pneg %p137
        $region26: #{tpu_custom_call.1} parent=11 // pred_check_branch
          %303 = sbr.rel (%p301) target = $region28
        $region27: #{tpu_custom_call.1} parent=11 // pred_region
          _
        $region28: #{tpu_custom_call.1} parent=11 // pred_fallthru
          _
        // Predicated region
        $region29: #{tpu_custom_call.1} parent=11 // pred_check
          %p304 = pneg %p158
        $region30: #{tpu_custom_call.1} parent=11 // pred_check_branch
          %306 = sbr.rel (%p304) target = $region32
        $region31: #{tpu_custom_call.1} parent=11 // pred_region
          %s308 = ssub.s32 2048, 2048
          %309 = vsyncadd [#allocation9], %s308
          %s310 = sshll.u32 [#allocation8], 4
          %s311 = int_to_ptr.vmem [resolvable:$true] %s310
          %316 = dma.hbm_to_vmem [thread:$0]  %s5, 2048, %s311, [#allocation9], 256, 256, 16
        $region32: #{tpu_custom_call.1} parent=11 // pred_fallthru
          _
        // Predicated region
        $region33: #{tpu_custom_call.1} parent=11 // pred_check
          %p317 = pneg %p179
        $region34: #{tpu_custom_call.1} parent=11 // pred_check_branch
          %319 = sbr.rel (%p317) target = $region36
        $region35: #{tpu_custom_call.1} parent=11 // pred_region
          %s321 = ssub.s32 512, 512
          %322 = vsyncadd [#allocation9], %s321
          %s323 = sshll.u32 [#allocation10], 4
          %s324 = int_to_ptr.vmem [resolvable:$true] %s323
          %329 = dma.hbm_to_vmem [thread:$0]  %s6, 512, %s324, [#allocation9], 256, 256, 16
        $region36: #{tpu_custom_call.1} parent=11 // pred_fallthru
          _
      $region12: #{tpu_custom_call.1} parent=5 // pred_fallthru
        _
      %p330 = scmp.lt.s32.totalorder %s27, 2
      // Predicated region
      $region37: #{tpu_custom_call.1} parent=5 // pred_check
        %p331 = pneg %p330
      $region38: #{tpu_custom_call.1} parent=5 // pred_check_branch
        %333 = sbr.rel (%p331) target = $region40
      $region39: #{tpu_custom_call.1} parent=5 // pred_region
        // Predicated region
        $region41: #{tpu_custom_call.1} parent=39 // pred_check
          %p334 = pneg %p47
        $region42: #{tpu_custom_call.1} parent=39 // pred_check_branch
          %336 = sbr.rel (%p334) target = $region44
        $region43: #{tpu_custom_call.1} parent=39 // pred_region
          %s337 = sand.u32 %s37, 1
          %s338 = scalar_lea.sflag [#allocation3], %s337
          %s339 = sand.u32 %s37, 1
          %s340 = smul.addr %s339, 384
          %s341 = scalar_lea.vmem [#allocation2], %s340
          %s343 = ssub.s32 6144, 6144
          %344 = vsyncadd %s338, %s343
          %s345 = smul.addr %s27, 96
          %s346 = smul.addr %s345, 64
          %s347 = scalar_lea.hbm %s0, %s346
          %s348 = sshll.u32 %s341, 4
          %s349 = int_to_ptr.vmem [resolvable:$true] %s348
          %354 = dma.hbm_to_vmem [thread:$0]  %s347, 6144, %s349, %s338, 192, 192, 12
        $region44: #{tpu_custom_call.1} parent=39 // pred_fallthru
          _
      $region40: #{tpu_custom_call.1} parent=5 // pred_fallthru
        _
      %p355 = scmp.le.s32.totalorder 1, %s27
      %p356 = scmp.lt.s32.totalorder %s27, 3
      %p357 = pnand %p355, %p356
      %p358 = pneg %p357
      // Predicated region
      $region45: #{tpu_custom_call.1} parent=5 // pred_check
        _
      $region46: #{tpu_custom_call.1} parent=5 // pred_check_branch
        %360 = sbr.rel (%p357) target = $region48
      $region47: #{tpu_custom_call.1} parent=5 // pred_region
        %s361 = ssub.s32 %s27, 1
        %s362 = sand.u32 %s40, 1
        %s363 = scalar_lea.sflag [#allocation3], %s362
        %s364 = sand.u32 %s40, 1
        %s365 = smul.addr %s364, 384
        %s366 = scalar_lea.vmem [#allocation2], %s365
        // Predicated region
        $region49: #{tpu_custom_call.1} parent=47 // pred_check
          %p367 = pneg %p53
        $region50: #{tpu_custom_call.1} parent=47 // pred_check_branch
          %369 = sbr.rel (%p367) target = $region52
        $region51: #{tpu_custom_call.1} parent=47 // pred_region
          %370 = dma.done %s363, 6144
        $region52: #{tpu_custom_call.1} parent=47 // pred_fallthru
          _
        // Predicated region
        $region53: #{tpu_custom_call.1} parent=47 // pred_check
          %p371 = pneg %p74
        $region54: #{tpu_custom_call.1} parent=47 // pred_check_branch
          %373 = sbr.rel (%p371) target = $region56
        $region55: #{tpu_custom_call.1} parent=47 // pred_region
          %374 = dma.done [#allocation6], 3072
        $region56: #{tpu_custom_call.1} parent=47 // pred_fallthru
          _
        // Predicated region
        $region57: #{tpu_custom_call.1} parent=47 // pred_check
          %p375 = pneg %p116
        $region58: #{tpu_custom_call.1} parent=47 // pred_check_branch
          %377 = sbr.rel (%p375) target = $region60
        $region59: #{tpu_custom_call.1} parent=47 // pred_region
          %378 = dma.done [#allocation6], 1024
        $region60: #{tpu_custom_call.1} parent=47 // pred_fallthru
          _
        // Predicated region
        $region61: #{tpu_custom_call.1} parent=47 // pred_check
          %p379 = pneg %p158
        $region62: #{tpu_custom_call.1} parent=47 // pred_check_branch
          %381 = sbr.rel (%p379) target = $region64
        $region63: #{tpu_custom_call.1} parent=47 // pred_region
          %382 = dma.done [#allocation9], 2048
        $region64: #{tpu_custom_call.1} parent=47 // pred_fallthru
          _
        // Predicated region
        $region65: #{tpu_custom_call.1} parent=47 // pred_check
          %p383 = pneg %p179
        $region66: #{tpu_custom_call.1} parent=47 // pred_check_branch
          %385 = sbr.rel (%p383) target = $region68
        $region67: #{tpu_custom_call.1} parent=47 // pred_region
          %386 = dma.done [#allocation9], 512
        $region68: #{tpu_custom_call.1} parent=47 // pred_fallthru
          _
        %s387 = sand.u32 %s40, 1
        %s388 = scalar_lea.sflag [#allocation3], %s387
        %s389 = sand.u32 %s40, 1
        %s390 = smul.addr %s389, 384
        %s391 = scalar_lea.vmem [#allocation2], %s390
        %p392 = pneg %p53
        %p393 = pneg %p50
        %p394 = pneg %p74
        %p395 = pneg %p71
        %p396 = pneg %p95
        %p397 = pneg %p92
        %p398 = pneg %p116
        %p399 = pneg %p113
        %p400 = pneg %p137
        %p401 = pneg %p134
        %p402 = pneg %p158
        %p403 = pneg %p155
        %p404 = pneg %p179
        %p405 = pneg %p176
        %p406 = pneg %p205
        %p407 = pneg %p202
        %s408 = sand.u32 %s192, 1
        %s409 = scalar_lea.sflag [#allocation4], %s408
        %s410 = sand.u32 %s192, 1
        %s411 = smul.addr %s410, 256
        %s412 = scalar_lea.vmem [#allocation11], %s411
        %p413 = pneg %p231
        %p414 = pneg %p228
        %s415 = sand.u32 %s32, 1
        %s416 = scalar_lea.sflag [#allocation13], %s415
        %s417 = sand.u32 %s218, 1
        %s418 = smul.addr %s417, 64
        %s419 = scalar_lea.vmem [#allocation12], %s418
        %p420 = pneg %p257
        %p421 = pneg %p254
        %s422 = sand.u32 %s32, 1
        %s423 = scalar_lea.sflag [#allocation13], %s422
        %s424 = sand.u32 %s244, 1
        %s425 = smul.addr %s424, 16
        %s426 = scalar_lea.vmem [#allocation14], %s425
        %v428 = vld [vmem:[%s366] sm:$0xff]
        %v429 = vld [vmem:[%s366 + $0x8] sm:$0xf]
        %v430 = vld [vmem:[%s366 + $0xc] sm:$0xff]
        %v431 = vld [vmem:[%s366 + $0x14] sm:$0xf]
        %v432 = vld [vmem:[%s366 + $0x18] sm:$0xff]
        %v433 = vld [vmem:[%s366 + $0x20] sm:$0xf]
        %v434 = vld [vmem:[%s366 + $0x24] sm:$0xff]
        %v435 = vld [vmem:[%s366 + $0x2c] sm:$0xf]
        %v436 = vld [vmem:[%s366 + $0x30] sm:$0xff]
        %v437 = vld [vmem:[%s366 + $0x38] sm:$0xf]
        %v438 = vld [vmem:[%s366 + $0x3c] sm:$0xff]
        %v439 = vld [vmem:[%s366 + $0x44] sm:$0xf]
        %v440 = vld [vmem:[%s366 + $0x48] sm:$0xff]
        %v441 = vld [vmem:[%s366 + $0x50] sm:$0xf]
        %v442 = vld [vmem:[%s366 + $0x54] sm:$0xff]
        %v443 = vld [vmem:[%s366 + $0x5c] sm:$0xf]
        %v444 = vld [vmem:[%s366 + $0x60] sm:$0xff]
        %v445 = vld [vmem:[%s366 + $0x68] sm:$0xf]
        %v446 = vld [vmem:[%s366 + $0x6c] sm:$0xff]
        %v447 = vld [vmem:[%s366 + $0x74] sm:$0xf]
        %v448 = vld [vmem:[%s366 + $0x78] sm:$0xff]
        %v449 = vld [vmem:[%s366 + $0x80] sm:$0xf]
        %v450 = vld [vmem:[%s366 + $0x84] sm:$0xff]
        %v451 = vld [vmem:[%s366 + $0x8c] sm:$0xf]
        %v452 = vld [vmem:[%s366 + $0x90] sm:$0xff]
        %v453 = vld [vmem:[%s366 + $0x98] sm:$0xf]
        %v454 = vld [vmem:[%s366 + $0x9c] sm:$0xff]
        %v455 = vld [vmem:[%s366 + $0xa4] sm:$0xf]
        %v456 = vld [vmem:[%s366 + $0xa8] sm:$0xff]
        %v457 = vld [vmem:[%s366 + $0xb0] sm:$0xf]
        %v458 = vld [vmem:[%s366 + $0xb4] sm:$0xff]
        %v459 = vld [vmem:[%s366 + $0xbc] sm:$0xf]
        %v460 = vld [vmem:[%s366 + $0xc0] sm:$0xff]
        %v461 = vld [vmem:[%s366 + $0xc8] sm:$0xf]
        %v462 = vld [vmem:[%s366 + $0xcc] sm:$0xff]
        %v463 = vld [vmem:[%s366 + $0xd4] sm:$0xf]
        %v464 = vld [vmem:[%s366 + $0xd8] sm:$0xff]
        %v465 = vld [vmem:[%s366 + $0xe0] sm:$0xf]
        %v466 = vld [vmem:[%s366 + $0xe4] sm:$0xff]
        %v467 = vld [vmem:[%s366 + $0xec] sm:$0xf]
        %v468 = vld [vmem:[%s366 + $0xf0] sm:$0xff]
        %v469 = vld [vmem:[%s366 + $0xf8] sm:$0xf]
        %v470 = vld [vmem:[%s366 + $0xfc] sm:$0xff]
        %v471 = vld [vmem:[%s366 + $0x104] sm:$0xf]
        %v472 = vld [vmem:[%s366 + $0x108] sm:$0xff]
        %v473 = vld [vmem:[%s366 + $0x110] sm:$0xf]
        %v474 = vld [vmem:[%s366 + $0x114] sm:$0xff]
        %v475 = vld [vmem:[%s366 + $0x11c] sm:$0xf]
        %v476 = vld [vmem:[%s366 + $0x120] sm:$0xff]
        %v477 = vld [vmem:[%s366 + $0x128] sm:$0xf]
        %v478 = vld [vmem:[%s366 + $0x12c] sm:$0xff]
        %v479 = vld [vmem:[%s366 + $0x134] sm:$0xf]
        %v480 = vld [vmem:[%s366 + $0x138] sm:$0xff]
        %v481 = vld [vmem:[%s366 + $0x140] sm:$0xf]
        %v482 = vld [vmem:[%s366 + $0x144] sm:$0xff]
        %v483 = vld [vmem:[%s366 + $0x14c] sm:$0xf]
        %v484 = vld [vmem:[%s366 + $0x150] sm:$0xff]
        %v485 = vld [vmem:[%s366 + $0x158] sm:$0xf]
        %v486 = vld [vmem:[%s366 + $0x15c] sm:$0xff]
        %v487 = vld [vmem:[%s366 + $0x164] sm:$0xf]
        %v488 = vld [vmem:[%s366 + $0x168] sm:$0xff]
        %v489 = vld [vmem:[%s366 + $0x170] sm:$0xf]
        %v490 = vld [vmem:[%s366 + $0x174] sm:$0xff]
        %v491 = vld [vmem:[%s366 + $0x17c] sm:$0xf]
        %v492 = vld [vmem:[#allocation5] sm:$0xf]
        %v493 = vld [vmem:[#allocation5 + $0x4] sm:$0xf]
        %v494 = vld [vmem:[#allocation5 + $0x8] sm:$0xf]
        %v495 = vld [vmem:[#allocation5 + $0xc] sm:$0xf]
        %v496 = vld [vmem:[#allocation5 + $0x10] sm:$0xf]
        %v497 = vld [vmem:[#allocation5 + $0x14] sm:$0xf]
        %v498 = vld [vmem:[#allocation5 + $0x18] sm:$0xf]
        %v499 = vld [vmem:[#allocation5 + $0x1c] sm:$0xf]
        %v500 = vld [vmem:[#allocation5 + $0x20] sm:$0xf]
        %v501 = vld [vmem:[#allocation5 + $0x24] sm:$0xf]
        %v502 = vld [vmem:[#allocation5 + $0x28] sm:$0xf]
        %v503 = vld [vmem:[#allocation5 + $0x2c] sm:$0xf]
        %v504 = vld [vmem:[#allocation5 + $0x30] sm:$0xf]
        %v505 = vld [vmem:[#allocation5 + $0x34] sm:$0xf]
        %v506 = vld [vmem:[#allocation5 + $0x38] sm:$0xf]
        %v507 = vld [vmem:[#allocation5 + $0x3c] sm:$0xf]
        %v508 = vld [vmem:[#allocation5 + $0x40] sm:$0xf]
        %v509 = vld [vmem:[#allocation5 + $0x44] sm:$0xf]
        %v510 = vld [vmem:[#allocation5 + $0x48] sm:$0xf]
        %v511 = vld [vmem:[#allocation5 + $0x4c] sm:$0xf]
        %v512 = vld [vmem:[#allocation5 + $0x50] sm:$0xf]
        %v513 = vld [vmem:[#allocation5 + $0x54] sm:$0xf]
        %v514 = vld [vmem:[#allocation5 + $0x58] sm:$0xf]
        %v515 = vld [vmem:[#allocation5 + $0x5c] sm:$0xf]
        %v516 = vld [vmem:[#allocation5 + $0x60] sm:$0xf]
        %v517 = vld [vmem:[#allocation5 + $0x64] sm:$0xf]
        %v518 = vld [vmem:[#allocation5 + $0x68] sm:$0xf]
        %v519 = vld [vmem:[#allocation5 + $0x6c] sm:$0xf]
        %v520 = vld [vmem:[#allocation5 + $0x70] sm:$0xf]
        %v521 = vld [vmem:[#allocation5 + $0x74] sm:$0xf]
        %v522 = vld [vmem:[#allocation5 + $0x78] sm:$0xf]
        %v523 = vld [vmem:[#allocation5 + $0x7c] sm:$0xf]
        %v524 = vld [vmem:[#allocation5 + $0x80] sm:$0xf]
        %v525 = vld [vmem:[#allocation5 + $0x84] sm:$0xf]
        %v526 = vld [vmem:[#allocation5 + $0x88] sm:$0xf]
        %v527 = vld [vmem:[#allocation5 + $0x8c] sm:$0xf]
        %v528 = vld [vmem:[#allocation5 + $0x90] sm:$0xf]
        %v529 = vld [vmem:[#allocation5 + $0x94] sm:$0xf]
        %v530 = vld [vmem:[#allocation5 + $0x98] sm:$0xf]
        %v531 = vld [vmem:[#allocation5 + $0x9c] sm:$0xf]
        %v532 = vld [vmem:[#allocation5 + $0xa0] sm:$0xf]
        %v533 = vld [vmem:[#allocation5 + $0xa4] sm:$0xf]
        %v534 = vld [vmem:[#allocation5 + $0xa8] sm:$0xf]
        %v535 = vld [vmem:[#allocation5 + $0xac] sm:$0xf]
        %v536 = vld [vmem:[#allocation5 + $0xb0] sm:$0xf]
        %v537 = vld [vmem:[#allocation5 + $0xb4] sm:$0xf]
        %v538 = vld [vmem:[#allocation5 + $0xb8] sm:$0xf]
        %v539 = vld [vmem:[#allocation5 + $0xbc] sm:$0xf]
        %v540 = vld [vmem:[%s2] sm:$0x1]
        %v542 = vlaneseq
        %v543 = vshrl.u32 %v542, 7
        %v544 = vsub.s32 0, %v543
        %v545 = vrot.slane %v540, %v544
        %v611 = vunpack.c.l.b16 %v428
        %v612 = vunpack.c.h.b16 %v428
        %v613 = vunpack.c.l.b16 %v429
        %v614 = vunpack.c.l.b16 %v430
        %v615 = vunpack.c.h.b16 %v430
        %v616 = vunpack.c.l.b16 %v431
        %v617 = vunpack.c.l.b16 %v432
        %v618 = vunpack.c.h.b16 %v432
        %v619 = vunpack.c.l.b16 %v433
        %v620 = vunpack.c.l.b16 %v434
        %v621 = vunpack.c.h.b16 %v434
        %v622 = vunpack.c.l.b16 %v435
        %v623 = vunpack.c.l.b16 %v436
        %v624 = vunpack.c.h.b16 %v436
        %v625 = vunpack.c.l.b16 %v437
        %v626 = vunpack.c.l.b16 %v438
        %v627 = vunpack.c.h.b16 %v438
        %v628 = vunpack.c.l.b16 %v439
        %v629 = vunpack.c.l.b16 %v440
        %v630 = vunpack.c.h.b16 %v440
        %v631 = vunpack.c.l.b16 %v441
        %v632 = vunpack.c.l.b16 %v442
        %v633 = vunpack.c.h.b16 %v442
        %v634 = vunpack.c.l.b16 %v443
        %v635 = vunpack.c.l.b16 %v444
        %v636 = vunpack.c.h.b16 %v444
        %v637 = vunpack.c.l.b16 %v445
        %v638 = vunpack.c.l.b16 %v446
        %v639 = vunpack.c.h.b16 %v446
        %v640 = vunpack.c.l.b16 %v447
        %v641 = vunpack.c.l.b16 %v448
        %v642 = vunpack.c.h.b16 %v448
        %v643 = vunpack.c.l.b16 %v449
        %v644 = vunpack.c.l.b16 %v450
        %v645 = vunpack.c.h.b16 %v450
        %v646 = vunpack.c.l.b16 %v451
        %v647 = vunpack.c.l.b16 %v452
        %v648 = vunpack.c.h.b16 %v452
        %v649 = vunpack.c.l.b16 %v453
        %v650 = vunpack.c.l.b16 %v454
        %v651 = vunpack.c.h.b16 %v454
        %v652 = vunpack.c.l.b16 %v455
        %v653 = vunpack.c.l.b16 %v456
        %v654 = vunpack.c.h.b16 %v456
        %v655 = vunpack.c.l.b16 %v457
        %v656 = vunpack.c.l.b16 %v458
        %v657 = vunpack.c.h.b16 %v458
        %v658 = vunpack.c.l.b16 %v459
        %v659 = vunpack.c.l.b16 %v460
        %v660 = vunpack.c.h.b16 %v460
        %v661 = vunpack.c.l.b16 %v461
        %v662 = vunpack.c.l.b16 %v462
        %v663 = vunpack.c.h.b16 %v462
        %v664 = vunpack.c.l.b16 %v463
        %v665 = vunpack.c.l.b16 %v464
        %v666 = vunpack.c.h.b16 %v464
        %v667 = vunpack.c.l.b16 %v465
        %v668 = vunpack.c.l.b16 %v466
        %v669 = vunpack.c.h.b16 %v466
        %v670 = vunpack.c.l.b16 %v467
        %v671 = vunpack.c.l.b16 %v468
        %v672 = vunpack.c.h.b16 %v468
        %v673 = vunpack.c.l.b16 %v469
        %v674 = vunpack.c.l.b16 %v470
        %v675 = vunpack.c.h.b16 %v470
        %v676 = vunpack.c.l.b16 %v471
        %v677 = vunpack.c.l.b16 %v472
        %v678 = vunpack.c.h.b16 %v472
        %v679 = vunpack.c.l.b16 %v473
        %v680 = vunpack.c.l.b16 %v474
        %v681 = vunpack.c.h.b16 %v474
        %v682 = vunpack.c.l.b16 %v475
        %v683 = vunpack.c.l.b16 %v476
        %v684 = vunpack.c.h.b16 %v476
        %v685 = vunpack.c.l.b16 %v477
        %v686 = vunpack.c.l.b16 %v478
        %v687 = vunpack.c.h.b16 %v478
        %v688 = vunpack.c.l.b16 %v479
        %v689 = vunpack.c.l.b16 %v480
        %v690 = vunpack.c.h.b16 %v480
        %v691 = vunpack.c.l.b16 %v481
        %v692 = vunpack.c.l.b16 %v482
        %v693 = vunpack.c.h.b16 %v482
        %v694 = vunpack.c.l.b16 %v483
        %v695 = vunpack.c.l.b16 %v484
        %v696 = vunpack.c.h.b16 %v484
        %v697 = vunpack.c.l.b16 %v485
        %v698 = vunpack.c.l.b16 %v486
        %v699 = vunpack.c.h.b16 %v486
        %v700 = vunpack.c.l.b16 %v487
        %v701 = vunpack.c.l.b16 %v488
        %v702 = vunpack.c.h.b16 %v488
        %v703 = vunpack.c.l.b16 %v489
        %v704 = vunpack.c.l.b16 %v490
        %v705 = vunpack.c.h.b16 %v490
        %v706 = vunpack.c.l.b16 %v491
        %v707 = vpack.c.b16 %v614, %v611
        %v708 = vpack.c.b16 %v615, %v612
        %v709 = vpack.c.b16 %v616, %v613
        %v710 = vpack.c.b16 %v620, %v617
        %v711 = vpack.c.b16 %v621, %v618
        %v712 = vpack.c.b16 %v622, %v619
        %v713 = vpack.c.b16 %v626, %v623
        %v714 = vpack.c.b16 %v627, %v624
        %v715 = vpack.c.b16 %v628, %v625
        %v716 = vpack.c.b16 %v632, %v629
        %v717 = vpack.c.b16 %v633, %v630
        %v718 = vpack.c.b16 %v634, %v631
        %v719 = vpack.c.b16 %v638, %v635
        %v720 = vpack.c.b16 %v639, %v636
        %v721 = vpack.c.b16 %v640, %v637
        %v722 = vpack.c.b16 %v644, %v641
        %v723 = vpack.c.b16 %v645, %v642
        %v724 = vpack.c.b16 %v646, %v643
        %v725 = vpack.c.b16 %v650, %v647
        %v726 = vpack.c.b16 %v651, %v648
        %v727 = vpack.c.b16 %v652, %v649
        %v728 = vpack.c.b16 %v656, %v653
        %v729 = vpack.c.b16 %v657, %v654
        %v730 = vpack.c.b16 %v658, %v655
        %v731 = vpack.c.b16 %v662, %v659
        %v732 = vpack.c.b16 %v663, %v660
        %v733 = vpack.c.b16 %v664, %v661
        %v734 = vpack.c.b16 %v668, %v665
        %v735 = vpack.c.b16 %v669, %v666
        %v736 = vpack.c.b16 %v670, %v667
        %v737 = vpack.c.b16 %v674, %v671
        %v738 = vpack.c.b16 %v675, %v672
        %v739 = vpack.c.b16 %v676, %v673
        %v740 = vpack.c.b16 %v680, %v677
        %v741 = vpack.c.b16 %v681, %v678
        %v742 = vpack.c.b16 %v682, %v679
        %v743 = vpack.c.b16 %v686, %v683
        %v744 = vpack.c.b16 %v687, %v684
        %v745 = vpack.c.b16 %v688, %v685
        %v746 = vpack.c.b16 %v692, %v689
        %v747 = vpack.c.b16 %v693, %v690
        %v748 = vpack.c.b16 %v694, %v691
        %v749 = vpack.c.b16 %v698, %v695
        %v750 = vpack.c.b16 %v699, %v696
        %v751 = vpack.c.b16 %v700, %v697
        %v752 = vpack.c.b16 %v704, %v701
        %v753 = vpack.c.b16 %v705, %v702
        %v754 = vpack.c.b16 %v706, %v703
        %v851 = vunpack.c.l.b16 %v492
        %v852 = vunpack.c.l.b16 %v493
        %v853 = vunpack.c.l.b16 %v494
        %v854 = vunpack.c.l.b16 %v495
        %v855 = vunpack.c.l.b16 %v496
        %v856 = vunpack.c.l.b16 %v497
        %v857 = vunpack.c.l.b16 %v498
        %v858 = vunpack.c.l.b16 %v499
        %v859 = vunpack.c.l.b16 %v500
        %v860 = vunpack.c.l.b16 %v501
        %v861 = vunpack.c.l.b16 %v502
        %v862 = vunpack.c.l.b16 %v503
        %v863 = vunpack.c.l.b16 %v504
        %v864 = vunpack.c.l.b16 %v505
        %v865 = vunpack.c.l.b16 %v506
        %v866 = vunpack.c.l.b16 %v507
        %v867 = vunpack.c.l.b16 %v508
        %v868 = vunpack.c.l.b16 %v509
        %v869 = vunpack.c.l.b16 %v510
        %v870 = vunpack.c.l.b16 %v511
        %v871 = vunpack.c.l.b16 %v512
        %v872 = vunpack.c.l.b16 %v513
        %v873 = vunpack.c.l.b16 %v514
        %v874 = vunpack.c.l.b16 %v515
        %v875 = vunpack.c.l.b16 %v516
        %v876 = vunpack.c.l.b16 %v517
        %v877 = vunpack.c.l.b16 %v518
        %v878 = vunpack.c.l.b16 %v519
        %v879 = vunpack.c.l.b16 %v520
        %v880 = vunpack.c.l.b16 %v521
        %v881 = vunpack.c.l.b16 %v522
        %v882 = vunpack.c.l.b16 %v523
        %v883 = vunpack.c.l.b16 %v524
        %v884 = vunpack.c.l.b16 %v525
        %v885 = vunpack.c.l.b16 %v526
        %v886 = vunpack.c.l.b16 %v527
        %v887 = vunpack.c.l.b16 %v528
        %v888 = vunpack.c.l.b16 %v529
        %v889 = vunpack.c.l.b16 %v530
        %v890 = vunpack.c.l.b16 %v531
        %v891 = vunpack.c.l.b16 %v532
        %v892 = vunpack.c.l.b16 %v533
        %v893 = vunpack.c.l.b16 %v534
        %v894 = vunpack.c.l.b16 %v535
        %v895 = vunpack.c.l.b16 %v536
        %v896 = vunpack.c.l.b16 %v537
        %v897 = vunpack.c.l.b16 %v538
        %v898 = vunpack.c.l.b16 %v539
        %v899 = vpack.c.b16 %v852, %v851
        %v900 = vpack.c.b16 %v854, %v853
        %v901 = vpack.c.b16 %v856, %v855
        %v902 = vpack.c.b16 %v858, %v857
        %v903 = vpack.c.b16 %v860, %v859
        %v904 = vpack.c.b16 %v862, %v861
        %v905 = vpack.c.b16 %v864, %v863
        %v906 = vpack.c.b16 %v866, %v865
        %v907 = vpack.c.b16 %v868, %v867
        %v908 = vpack.c.b16 %v870, %v869
        %v909 = vpack.c.b16 %v872, %v871
        %v910 = vpack.c.b16 %v874, %v873
        %v911 = vpack.c.b16 %v876, %v875
        %v912 = vpack.c.b16 %v878, %v877
        %v913 = vpack.c.b16 %v880, %v879
        %v914 = vpack.c.b16 %v882, %v881
        %v915 = vpack.c.b16 %v884, %v883
        %v916 = vpack.c.b16 %v886, %v885
        %v917 = vpack.c.b16 %v888, %v887
        %v918 = vpack.c.b16 %v890, %v889
        %v919 = vpack.c.b16 %v892, %v891
        %v920 = vpack.c.b16 %v894, %v893
        %v921 = vpack.c.b16 %v896, %v895
        %v922 = vpack.c.b16 %v898, %v897
        %947 = vmatprep.subr.bf16.mxu0 0
        %948 = vmatpush1.bf16.msra.mxu0 %v899
        %949 = vmatprep.subr.bf16.mxu0 0
        %950 = vmatpush1.bf16.msra.mxu0 %v900
        %951 = vmatprep.subr.bf16.mxu0 0
        %952 = vmatpush1.bf16.msra.mxu0 %v901
        %953 = vmatprep.subr.bf16.mxu0 0
        %954 = vmatpush1.bf16.msra.mxu0 %v902
        %955 = vmatprep.subr.bf16.mxu0 0
        %956 = vmatpush1.bf16.msra.mxu0 %v903
        %957 = vmatprep.subr.bf16.mxu0 0
        %958 = vmatpush1.bf16.msra.mxu0 %v904
        %959 = vmatprep.subr.bf16.mxu0 0
        %960 = vmatpush1.bf16.msra.mxu0 %v905
        %961 = vmatprep.subr.bf16.mxu0 0
        %962 = vmatpush1.bf16.msra.mxu0 %v906
        %963 = vmatprep.subr.bf16.mxu0 0
        %964 = vmatpush1.bf16.msra.mxu0 %v907
        %965 = vmatprep.subr.bf16.mxu0 0
        %966 = vmatpush1.bf16.msra.mxu0 %v908
        %967 = vmatprep.subr.bf16.mxu0 0
        %968 = vmatpush1.bf16.msra.mxu0 %v909
        %969 = vmatprep.subr.bf16.mxu0 0
        %970 = vmatpush1.bf16.msra.mxu0 %v910
        %971 = vmatprep.subr.bf16.mxu0 0
        %972 = vmatpush1.bf16.msra.mxu0 %v911
        %973 = vmatprep.subr.bf16.mxu0 0
        %974 = vmatpush1.bf16.msra.mxu0 %v912
        %975 = vmatprep.subr.bf16.mxu0 0
        %976 = vmatpush1.bf16.msra.mxu0 %v913
        %977 = vmatprep.subr.bf16.mxu0 0
        %978 = vmatpush1.bf16.msra.mxu0 %v914
        %979 = vmatprep.mubr.bf16.mxu0 %v708
        %980 = vmatmul.mubr.bf16.gmra.mrb[0].mxu0 %v707
        %v981 = vpop.f32.mrb[0].mxu0
        %v982 = vadd.f32 %v545, %v981
        %v983 = vpop.f32.mrb[0].mxu0
        %v984 = vpop.f32.mrb[0].mxu0
        %v985 = vadd.f32 %v545, %v984
        %v986 = vpop.f32.mrb[0].mxu0
        %987 = vmatprep.mubr.bf16.mxu0 %v711
        %988 = vmatmul.mubr.bf16.gmra.mrb[0].mxu0 %v710
        %v989 = vpop.f32.mrb[0].mxu0
        %v990 = vadd.f32 %v545, %v989
        %v991 = vpop.f32.mrb[0].mxu0
        %v992 = vpop.f32.mrb[0].mxu0
        %v993 = vadd.f32 %v545, %v992
        %v994 = vpop.f32.mrb[0].mxu0
        %995 = vmatprep.mubr.bf16.mxu0 %v714
        %996 = vmatmul.mubr.bf16.gmra.mrb[0].mxu0 %v713
        %v997 = vpop.f32.mrb[0].mxu0
        %v998 = vadd.f32 %v545, %v997
        %v999 = vpop.f32.mrb[0].mxu0
        %v1000 = vpop.f32.mrb[0].mxu0
        %v1001 = vadd.f32 %v545, %v1000
        %v1002 = vpop.f32.mrb[0].mxu0
        %1003 = vmatprep.mubr.bf16.mxu0 %v717
        %1004 = vmatmul.mubr.bf16.gmra.mrb[0].mxu0 %v716
        %v1005 = vpop.f32.mrb[0].mxu0
        %v1006 = vadd.f32 %v545, %v1005
        %v1007 = vpop.f32.mrb[0].mxu0
        %v1008 = vpop.f32.mrb[0].mxu0
        %v1009 = vadd.f32 %v545, %v1008
        %v1010 = vpop.f32.mrb[0].mxu0
        %1011 = vmatprep.mubr.bf16.mxu0 %v720
        %1012 = vmatmul.mubr.bf16.gmra.mrb[0].mxu0 %v719
        %v1013 = vpop.f32.mrb[0].mxu0
        %v1014 = vadd.f32 %v545, %v1013
        %v1015 = vpop.f32.mrb[0].mxu0
        %v1016 = vpop.f32.mrb[0].mxu0
        %v1017 = vadd.f32 %v545, %v1016
        %v1018 = vpop.f32.mrb[0].mxu0
        %1019 = vmatprep.mubr.bf16.mxu0 %v723
        %1020 = vmatmul.mubr.bf16.gmra.mrb[0].mxu0 %v722
        %v1021 = vpop.f32.mrb[0].mxu0
        %v1022 = vadd.f32 %v545, %v1021
        %v1023 = vpop.f32.mrb[0].mxu0
        %v1024 = vpop.f32.mrb[0].mxu0
        %v1025 = vadd.f32 %v545, %v1024
        %v1026 = vpop.f32.mrb[0].mxu0
        %1027 = vmatprep.mubr.bf16.mxu0 %v726
        %1028 = vmatmul.mubr.bf16.gmra.mrb[0].mxu0 %v725
        %v1029 = vpop.f32.mrb[0].mxu0
        %v1030 = vadd.f32 %v545, %v1029
        %v1031 = vpop.f32.mrb[0].mxu0
        %v1032 = vpop.f32.mrb[0].mxu0
        %v1033 = vadd.f32 %v545, %v1032
        %v1034 = vpop.f32.mrb[0].mxu0
        %1035 = vmatprep.mubr.bf16.mxu0 %v729
        %1036 = vmatmul.mubr.bf16.gmra.mrb[0].mxu0 %v728
        %v1037 = vpop.f32.mrb[0].mxu0
        %v1038 = vadd.f32 %v545, %v1037
        %v1039 = vpop.f32.mrb[0].mxu0
        %v1040 = vpop.f32.mrb[0].mxu0
        %v1041 = vadd.f32 %v545, %v1040
        %v1042 = vpop.f32.mrb[0].mxu0
        %1043 = vmatprep.mubr.bf16.mxu0 %v732
        %1044 = vmatmul.mubr.bf16.gmra.mrb[0].mxu0 %v731
        %v1045 = vpop.f32.mrb[0].mxu0
        %v1046 = vadd.f32 %v545, %v1045
        %v1047 = vpop.f32.mrb[0].mxu0
        %v1048 = vpop.f32.mrb[0].mxu0
        %v1049 = vadd.f32 %v545, %v1048
        %v1050 = vpop.f32.mrb[0].mxu0
        %1051 = vmatprep.mubr.bf16.mxu0 %v735
        %1052 = vmatmul.mubr.bf16.gmra.mrb[0].mxu0 %v734
        %v1053 = vpop.f32.mrb[0].mxu0
        %v1054 = vadd.f32 %v545, %v1053
        %v1055 = vpop.f32.mrb[0].mxu0
        %v1056 = vpop.f32.mrb[0].mxu0
        %v1057 = vadd.f32 %v545, %v1056
        %v1058 = vpop.f32.mrb[0].mxu0
        %1059 = vmatprep.mubr.bf16.mxu0 %v738
        %1060 = vmatmul.mubr.bf16.gmra.mrb[0].mxu0 %v737
        %v1061 = vpop.f32.mrb[0].mxu0
        %v1062 = vadd.f32 %v545, %v1061
        %v1063 = vpop.f32.mrb[0].mxu0
        %v1064 = vpop.f32.mrb[0].mxu0
        %v1065 = vadd.f32 %v545, %v1064
        %v1066 = vpop.f32.mrb[0].mxu0
        %1067 = vmatprep.mubr.bf16.mxu0 %v741
        %1068 = vmatmul.mubr.bf16.gmra.mrb[0].mxu0 %v740
        %v1069 = vpop.f32.mrb[0].mxu0
        %v1070 = vadd.f32 %v545, %v1069
        %v1071 = vpop.f32.mrb[0].mxu0
        %v1072 = vpop.f32.mrb[0].mxu0
        %v1073 = vadd.f32 %v545, %v1072
        %v1074 = vpop.f32.mrb[0].mxu0
        %1075 = vmatprep.mubr.bf16.mxu0 %v744
        %1076 = vmatmul.mubr.bf16.gmra.mrb[0].mxu0 %v743
        %v1077 = vpop.f32.mrb[0].mxu0
        %v1078 = vadd.f32 %v545, %v1077
        %v1079 = vpop.f32.mrb[0].mxu0
        %v1080 = vpop.f32.mrb[0].mxu0
        %v1081 = vadd.f32 %v545, %v1080
        %v1082 = vpop.f32.mrb[0].mxu0
        %1083 = vmatprep.mubr.bf16.mxu0 %v747
        %1084 = vmatmul.mubr.bf16.gmra.mrb[0].mxu0 %v746
        %v1085 = vpop.f32.mrb[0].mxu0
        %v1086 = vadd.f32 %v545, %v1085
        %v1087 = vpop.f32.mrb[0].mxu0
        %v1088 = vpop.f32.mrb[0].mxu0
        %v1089 = vadd.f32 %v545, %v1088
        %v1090 = vpop.f32.mrb[0].mxu0
        %1091 = vmatprep.mubr.bf16.mxu0 %v750
        %1092 = vmatmul.mubr.bf16.gmra.mrb[0].mxu0 %v749
        %v1093 = vpop.f32.mrb[0].mxu0
        %v1094 = vadd.f32 %v545, %v1093
        %v1095 = vpop.f32.mrb[0].mxu0
        %v1096 = vpop.f32.mrb[0].mxu0
        %v1097 = vadd.f32 %v545, %v1096
        %v1098 = vpop.f32.mrb[0].mxu0
        %1099 = vmatprep.mubr.bf16.mxu0 %v753
        %1100 = vmatmul.mubr.bf16.gmra.mrb[0].mxu0 %v752
        %v1101 = vpop.f32.mrb[0].mxu0
        %v1102 = vadd.f32 %v545, %v1101
        %v1103 = vpop.f32.mrb[0].mxu0
        %v1104 = vpop.f32.mrb[0].mxu0
        %v1105 = vadd.f32 %v545, %v1104
        %v1106 = vpop.f32.mrb[0].mxu0
        %1107 = vdwg.mxu0
        %1108 = vmatprep.subr.bf16.mxu0 0
        %1109 = vmatpush1.bf16.msra.mxu0 %v915
        %1110 = vmatprep.subr.bf16.mxu0 0
        %1111 = vmatpush1.bf16.msra.mxu0 %v916
        %1112 = vmatprep.subr.bf16.mxu0 0
        %1113 = vmatpush1.bf16.msra.mxu0 %v917
        %1114 = vmatprep.subr.bf16.mxu0 0
        %1115 = vmatpush1.bf16.msra.mxu0 %v918
        %1116 = vmatprep.subr.bf16.mxu0 0
        %1117 = vmatpush1.bf16.msra.mxu0 %v919
        %1118 = vmatprep.subr.bf16.mxu0 0
        %1119 = vmatpush1.bf16.msra.mxu0 %v920
        %1120 = vmatprep.subr.bf16.mxu0 0
        %1121 = vmatpush1.bf16.msra.mxu0 %v921
        %1122 = vmatprep.subr.bf16.mxu0 0
        %1123 = vmatpush1.bf16.msra.mxu0 %v922
        %1124 = vmatprep.subr.bf16.mxu0 0
        %1125 = vmatpush1.bf16.msra.mxu0 0
        %1126 = vmatprep.subr.bf16.mxu0 0
        %1127 = vmatpush1.bf16.msra.mxu0 0
        %1128 = vmatprep.subr.bf16.mxu0 0
        %1129 = vmatpush1.bf16.msra.mxu0 0
        %1130 = vmatprep.subr.bf16.mxu0 0
        %1131 = vmatpush1.bf16.msra.mxu0 0
        %1132 = vmatprep.subr.bf16.mxu0 0
        %1133 = vmatpush1.bf16.msra.mxu0 0
        %1134 = vmatprep.subr.bf16.mxu0 0
        %1135 = vmatpush1.bf16.msra.mxu0 0
        %1136 = vmatprep.subr.bf16.mxu0 0
        %1137 = vmatpush1.bf16.msra.mxu0 0
        %1138 = vmatprep.subr.bf16.mxu0 0
        %1139 = vmatpush1.bf16.msra.mxu0 0
        %1140 = vmatprep.mubr.bf16.mxu0 0
        %1141 = vmatmul.mubr.bf16.gmra.mrb[0].mxu0 %v709
        %v1142 = vpop.f32.mrb[0].mxu0
        %v1143 = vadd.f32 %v982, %v1142
        %v1144 = vpop.f32.mrb[0].mxu0
        %v1145 = vpop.f32.mrb[0].mxu0
        %v1146 = vadd.f32 %v985, %v1145
        %v1147 = vpop.f32.mrb[0].mxu0
        %1148 = vmatprep.mubr.bf16.mxu0 0
        %1149 = vmatmul.mubr.bf16.gmra.mrb[0].mxu0 %v712
        %v1150 = vpop.f32.mrb[0].mxu0
        %v1151 = vadd.f32 %v990, %v1150
        %v1152 = vpop.f32.mrb[0].mxu0
        %v1153 = vpop.f32.mrb[0].mxu0
        %v1154 = vadd.f32 %v993, %v1153
        %v1155 = vpop.f32.mrb[0].mxu0
        %1156 = vmatprep.mubr.bf16.mxu0 0
        %1157 = vmatmul.mubr.bf16.gmra.mrb[0].mxu0 %v715
        %v1158 = vpop.f32.mrb[0].mxu0
        %v1159 = vadd.f32 %v998, %v1158
        %v1160 = vpop.f32.mrb[0].mxu0
        %v1161 = vpop.f32.mrb[0].mxu0
        %v1162 = vadd.f32 %v1001, %v1161
        %v1163 = vpop.f32.mrb[0].mxu0
        %1164 = vmatprep.mubr.bf16.mxu0 0
        %1165 = vmatmul.mubr.bf16.gmra.mrb[0].mxu0 %v718
        %v1166 = vpop.f32.mrb[0].mxu0
        %v1167 = vadd.f32 %v1006, %v1166
        %v1168 = vpop.f32.mrb[0].mxu0
        %v1169 = vpop.f32.mrb[0].mxu0
        %v1170 = vadd.f32 %v1009, %v1169
        %v1171 = vpop.f32.mrb[0].mxu0
        %1172 = vmatprep.mubr.bf16.mxu0 0
        %1173 = vmatmul.mubr.bf16.gmra.mrb[0].mxu0 %v721
        %v1174 = vpop.f32.mrb[0].mxu0
        %v1175 = vadd.f32 %v1014, %v1174
        %v1176 = vpop.f32.mrb[0].mxu0
        %v1177 = vpop.f32.mrb[0].mxu0
        %v1178 = vadd.f32 %v1017, %v1177
        %v1179 = vpop.f32.mrb[0].mxu0
        %1180 = vmatprep.mubr.bf16.mxu0 0
        %1181 = vmatmul.mubr.bf16.gmra.mrb[0].mxu0 %v724
        %v1182 = vpop.f32.mrb[0].mxu0
        %v1183 = vadd.f32 %v1022, %v1182
        %v1184 = vpop.f32.mrb[0].mxu0
        %v1185 = vpop.f32.mrb[0].mxu0
        %v1186 = vadd.f32 %v1025, %v1185
        %v1187 = vpop.f32.mrb[0].mxu0
        %1188 = vmatprep.mubr.bf16.mxu0 0
        %1189 = vmatmul.mubr.bf16.gmra.mrb[0].mxu0 %v727
        %v1190 = vpop.f32.mrb[0].mxu0
        %v1191 = vadd.f32 %v1030, %v1190
        %v1192 = vpop.f32.mrb[0].mxu0
        %v1193 = vpop.f32.mrb[0].mxu0
        %v1194 = vadd.f32 %v1033, %v1193
        %v1195 = vpop.f32.mrb[0].mxu0
        %1196 = vmatprep.mubr.bf16.mxu0 0
        %1197 = vmatmul.mubr.bf16.gmra.mrb[0].mxu0 %v730
        %v1198 = vpop.f32.mrb[0].mxu0
        %v1199 = vadd.f32 %v1038, %v1198
        %v1200 = vpop.f32.mrb[0].mxu0
        %v1201 = vpop.f32.mrb[0].mxu0
        %v1202 = vadd.f32 %v1041, %v1201
        %v1203 = vpop.f32.mrb[0].mxu0
        %1204 = vmatprep.mubr.bf16.mxu0 0
        %1205 = vmatmul.mubr.bf16.gmra.mrb[0].mxu0 %v733
        %v1206 = vpop.f32.mrb[0].mxu0
        %v1207 = vadd.f32 %v1046, %v1206
        %v1208 = vpop.f32.mrb[0].mxu0
        %v1209 = vpop.f32.mrb[0].mxu0
        %v1210 = vadd.f32 %v1049, %v1209
        %v1211 = vpop.f32.mrb[0].mxu0
        %1212 = vmatprep.mubr.bf16.mxu0 0
        %1213 = vmatmul.mubr.bf16.gmra.mrb[0].mxu0 %v736
        %v1214 = vpop.f32.mrb[0].mxu0
        %v1215 = vadd.f32 %v1054, %v1214
        %v1216 = vpop.f32.mrb[0].mxu0
        %v1217 = vpop.f32.mrb[0].mxu0
        %v1218 = vadd.f32 %v1057, %v1217
        %v1219 = vpop.f32.mrb[0].mxu0
        %1220 = vmatprep.mubr.bf16.mxu0 0
        %1221 = vmatmul.mubr.bf16.gmra.mrb[0].mxu0 %v739
        %v1222 = vpop.f32.mrb[0].mxu0
        %v1223 = vadd.f32 %v1062, %v1222
        %v1224 = vpop.f32.mrb[0].mxu0
        %v1225 = vpop.f32.mrb[0].mxu0
        %v1226 = vadd.f32 %v1065, %v1225
        %v1227 = vpop.f32.mrb[0].mxu0
        %1228 = vmatprep.mubr.bf16.mxu0 0
        %1229 = vmatmul.mubr.bf16.gmra.mrb[0].mxu0 %v742
        %v1230 = vpop.f32.mrb[0].mxu0
        %v1231 = vadd.f32 %v1070, %v1230
        %v1232 = vpop.f32.mrb[0].mxu0
        %v1233 = vpop.f32.mrb[0].mxu0
        %v1234 = vadd.f32 %v1073, %v1233
        %v1235 = vpop.f32.mrb[0].mxu0
        %1236 = vmatprep.mubr.bf16.mxu0 0
        %1237 = vmatmul.mubr.bf16.gmra.mrb[0].mxu0 %v745
        %v1238 = vpop.f32.mrb[0].mxu0
        %v1239 = vadd.f32 %v1078, %v1238
        %v1240 = vpop.f32.mrb[0].mxu0
        %v1241 = vpop.f32.mrb[0].mxu0
        %v1242 = vadd.f32 %v1081, %v1241
        %v1243 = vpop.f32.mrb[0].mxu0
        %1244 = vmatprep.mubr.bf16.mxu0 0
        %1245 = vmatmul.mubr.bf16.gmra.mrb[0].mxu0 %v748
        %v1246 = vpop.f32.mrb[0].mxu0
        %v1247 = vadd.f32 %v1086, %v1246
        %v1248 = vpop.f32.mrb[0].mxu0
        %v1249 = vpop.f32.mrb[0].mxu0
        %v1250 = vadd.f32 %v1089, %v1249
        %v1251 = vpop.f32.mrb[0].mxu0
        %1252 = vmatprep.mubr.bf16.mxu0 0
        %1253 = vmatmul.mubr.bf16.gmra.mrb[0].mxu0 %v751
        %v1254 = vpop.f32.mrb[0].mxu0
        %v1255 = vadd.f32 %v1094, %v1254
        %v1256 = vpop.f32.mrb[0].mxu0
        %v1257 = vpop.f32.mrb[0].mxu0
        %v1258 = vadd.f32 %v1097, %v1257
        %v1259 = vpop.f32.mrb[0].mxu0
        %1260 = vmatprep.mubr.bf16.mxu0 0
        %1261 = vmatmul.mubr.bf16.gmra.mrb[0].mxu0 %v754
        %v1262 = vpop.f32.mrb[0].mxu0
        %v1263 = vadd.f32 %v1102, %v1262
        %v1264 = vpop.f32.mrb[0].mxu0
        %v1265 = vpop.f32.mrb[0].mxu0
        %v1266 = vadd.f32 %v1105, %v1265
        %v1267 = vpop.f32.mrb[0].mxu0
        %1268 = vdwg.mxu0
        %v1269 = vmax.f32 %v1143, 0.0
        %v1270 = vmax.f32 %v1146, 0.0
        %v1271 = vmax.f32 %v1151, 0.0
        %v1272 = vmax.f32 %v1154, 0.0
        %v1273 = vmax.f32 %v1159, 0.0
        %v1274 = vmax.f32 %v1162, 0.0
        %v1275 = vmax.f32 %v1167, 0.0
        %v1276 = vmax.f32 %v1170, 0.0
        %v1277 = vmax.f32 %v1175, 0.0
        %v1278 = vmax.f32 %v1178, 0.0
        %v1279 = vmax.f32 %v1183, 0.0
        %v1280 = vmax.f32 %v1186, 0.0
        %v1281 = vmax.f32 %v1191, 0.0
        %v1282 = vmax.f32 %v1194, 0.0
        %v1283 = vmax.f32 %v1199, 0.0
        %v1284 = vmax.f32 %v1202, 0.0
        %v1285 = vmax.f32 %v1207, 0.0
        %v1286 = vmax.f32 %v1210, 0.0
        %v1287 = vmax.f32 %v1215, 0.0
        %v1288 = vmax.f32 %v1218, 0.0
        %v1289 = vmax.f32 %v1223, 0.0
        %v1290 = vmax.f32 %v1226, 0.0
        %v1291 = vmax.f32 %v1231, 0.0
        %v1292 = vmax.f32 %v1234, 0.0
        %v1293 = vmax.f32 %v1239, 0.0
        %v1294 = vmax.f32 %v1242, 0.0
        %v1295 = vmax.f32 %v1247, 0.0
        %v1296 = vmax.f32 %v1250, 0.0
        %v1297 = vmax.f32 %v1255, 0.0
        %v1298 = vmax.f32 %v1258, 0.0
        %v1299 = vmax.f32 %v1263, 0.0
        %v1300 = vmax.f32 %v1266, 0.0
        %v1301 = vpack.c.bf16 %v1270, %v1269
        %v1302 = vpack.c.bf16 %v1272, %v1271
        %v1303 = vpack.c.bf16 %v1274, %v1273
        %v1304 = vpack.c.bf16 %v1276, %v1275
        %v1305 = vpack.c.bf16 %v1278, %v1277
        %v1306 = vpack.c.bf16 %v1280, %v1279
        %v1307 = vpack.c.bf16 %v1282, %v1281
        %v1308 = vpack.c.bf16 %v1284, %v1283
        %v1309 = vpack.c.bf16 %v1286, %v1285
        %v1310 = vpack.c.bf16 %v1288, %v1287
        %v1311 = vpack.c.bf16 %v1290, %v1289
        %v1312 = vpack.c.bf16 %v1292, %v1291
        %v1313 = vpack.c.bf16 %v1294, %v1293
        %v1314 = vpack.c.bf16 %v1296, %v1295
        %v1315 = vpack.c.bf16 %v1298, %v1297
        %v1316 = vpack.c.bf16 %v1300, %v1299
        %v1317 = vld [vmem:[#allocation7] sm:$0xf]
        %v1318 = vld [vmem:[#allocation7 + $0x4] sm:$0xf]
        %v1319 = vld [vmem:[#allocation7 + $0x8] sm:$0xf]
        %v1320 = vld [vmem:[#allocation7 + $0xc] sm:$0xf]
        %v1321 = vld [vmem:[#allocation7 + $0x10] sm:$0xf]
        %v1322 = vld [vmem:[#allocation7 + $0x14] sm:$0xf]
        %v1323 = vld [vmem:[#allocation7 + $0x18] sm:$0xf]
        %v1324 = vld [vmem:[#allocation7 + $0x1c] sm:$0xf]
        %v1325 = vld [vmem:[#allocation7 + $0x20] sm:$0xf]
        %v1326 = vld [vmem:[#allocation7 + $0x24] sm:$0xf]
        %v1327 = vld [vmem:[#allocation7 + $0x28] sm:$0xf]
        %v1328 = vld [vmem:[#allocation7 + $0x2c] sm:$0xf]
        %v1329 = vld [vmem:[#allocation7 + $0x30] sm:$0xf]
        %v1330 = vld [vmem:[#allocation7 + $0x34] sm:$0xf]
        %v1331 = vld [vmem:[#allocation7 + $0x38] sm:$0xf]
        %v1332 = vld [vmem:[#allocation7 + $0x3c] sm:$0xf]
        %v1333 = vld [vmem:[%s4] sm:$0x1]
        %v1335 = vlaneseq
        %v1336 = vshrl.u32 %v1335, 7
        %v1337 = vsub.s32 0, %v1336
        %v1338 = vrot.slane %v1333, %v1337
        %v1356 = vunpack.c.l.b16 %v1317
        %v1357 = vunpack.c.l.b16 %v1318
        %v1358 = vunpack.c.l.b16 %v1319
        %v1359 = vunpack.c.l.b16 %v1320
        %v1360 = vunpack.c.l.b16 %v1321
        %v1361 = vunpack.c.l.b16 %v1322
        %v1362 = vunpack.c.l.b16 %v1323
        %v1363 = vunpack.c.l.b16 %v1324
        %v1364 = vunpack.c.l.b16 %v1325
        %v1365 = vunpack.c.l.b16 %v1326
        %v1366 = vunpack.c.l.b16 %v1327
        %v1367 = vunpack.c.l.b16 %v1328
        %v1368 = vunpack.c.l.b16 %v1329
        %v1369 = vunpack.c.l.b16 %v1330
        %v1370 = vunpack.c.l.b16 %v1331
        %v1371 = vunpack.c.l.b16 %v1332
        %v1372 = vpack.c.b16 %v1357, %v1356
        %v1373 = vpack.c.b16 %v1359, %v1358
        %v1374 = vpack.c.b16 %v1361, %v1360
        %v1375 = vpack.c.b16 %v1363, %v1362
        %v1376 = vpack.c.b16 %v1365, %v1364
        %v1377 = vpack.c.b16 %v1367, %v1366
        %v1378 = vpack.c.b16 %v1369, %v1368
        %v1379 = vpack.c.b16 %v1371, %v1370
        %1388 = vmatprep.subr.bf16.mxu0 0
        %1389 = vmatpush1.bf16.msra.mxu0 %v1372
        %1390 = vmatprep.subr.bf16.mxu0 0
        %1391 = vmatpush1.bf16.msra.mxu0 %v1373
        %1392 = vmatprep.subr.bf16.mxu0 0
        %1393 = vmatpush1.bf16.msra.mxu0 %v1374
        %1394 = vmatprep.subr.bf16.mxu0 0
        %1395 = vmatpush1.bf16.msra.mxu0 %v1375
        %1396 = vmatprep.subr.bf16.mxu0 0
        %1397 = vmatpush1.bf16.msra.mxu0 %v1376
        %1398 = vmatprep.subr.bf16.mxu0 0
        %1399 = vmatpush1.bf16.msra.mxu0 %v1377
        %1400 = vmatprep.subr.bf16.mxu0 0
        %1401 = vmatpush1.bf16.msra.mxu0 %v1378
        %1402 = vmatprep.subr.bf16.mxu0 0
        %1403 = vmatpush1.bf16.msra.mxu0 %v1379
        %1404 = vmatprep.subr.bf16.mxu0 0
        %1405 = vmatpush1.bf16.msra.mxu0 0
        %1406 = vmatprep.subr.bf16.mxu0 0
        %1407 = vmatpush1.bf16.msra.mxu0 0
        %1408 = vmatprep.subr.bf16.mxu0 0
        %1409 = vmatpush1.bf16.msra.mxu0 0
        %1410 = vmatprep.subr.bf16.mxu0 0
        %1411 = vmatpush1.bf16.msra.mxu0 0
        %1412 = vmatprep.subr.bf16.mxu0 0
        %1413 = vmatpush1.bf16.msra.mxu0 0
        %1414 = vmatprep.subr.bf16.mxu0 0
        %1415 = vmatpush1.bf16.msra.mxu0 0
        %1416 = vmatprep.subr.bf16.mxu0 0
        %1417 = vmatpush1.bf16.msra.mxu0 0
        %1418 = vmatprep.subr.bf16.mxu0 0
        %1419 = vmatpush1.bf16.msra.mxu0 0
        %1420 = vmatprep.mubr.bf16.mxu0 0
        %1421 = vmatmul.mubr.bf16.gmra.mrb[0].mxu0 %v1301
        %v1422 = vpop.f32.mrb[0].mxu0
        %v1423 = vadd.f32 %v1338, %v1422
        %v1424 = vpop.f32.mrb[0].mxu0
        %v1425 = vpop.f32.mrb[0].mxu0
        %v1426 = vadd.f32 %v1338, %v1425
        %v1427 = vpop.f32.mrb[0].mxu0
        %1428 = vmatprep.mubr.bf16.mxu0 0
        %1429 = vmatmul.mubr.bf16.gmra.mrb[0].mxu0 %v1302
        %v1430 = vpop.f32.mrb[0].mxu0
        %v1431 = vadd.f32 %v1338, %v1430
        %v1432 = vpop.f32.mrb[0].mxu0
        %v1433 = vpop.f32.mrb[0].mxu0
        %v1434 = vadd.f32 %v1338, %v1433
        %v1435 = vpop.f32.mrb[0].mxu0
        %1436 = vmatprep.mubr.bf16.mxu0 0
        %1437 = vmatmul.mubr.bf16.gmra.mrb[0].mxu0 %v1303
        %v1438 = vpop.f32.mrb[0].mxu0
        %v1439 = vadd.f32 %v1338, %v1438
        %v1440 = vpop.f32.mrb[0].mxu0
        %v1441 = vpop.f32.mrb[0].mxu0
        %v1442 = vadd.f32 %v1338, %v1441
        %v1443 = vpop.f32.mrb[0].mxu0
        %1444 = vmatprep.mubr.bf16.mxu0 0
        %1445 = vmatmul.mubr.bf16.gmra.mrb[0].mxu0 %v1304
        %v1446 = vpop.f32.mrb[0].mxu0
        %v1447 = vadd.f32 %v1338, %v1446
        %v1448 = vpop.f32.mrb[0].mxu0
        %v1449 = vpop.f32.mrb[0].mxu0
        %v1450 = vadd.f32 %v1338, %v1449
        %v1451 = vpop.f32.mrb[0].mxu0
        %1452 = vmatprep.mubr.bf16.mxu0 0
        %1453 = vmatmul.mubr.bf16.gmra.mrb[0].mxu0 %v1305
        %v1454 = vpop.f32.mrb[0].mxu0
        %v1455 = vadd.f32 %v1338, %v1454
        %v1456 = vpop.f32.mrb[0].mxu0
        %v1457 = vpop.f32.mrb[0].mxu0
        %v1458 = vadd.f32 %v1338, %v1457
        %v1459 = vpop.f32.mrb[0].mxu0
        %1460 = vmatprep.mubr.bf16.mxu0 0
        %1461 = vmatmul.mubr.bf16.gmra.mrb[0].mxu0 %v1306
        %v1462 = vpop.f32.mrb[0].mxu0
        %v1463 = vadd.f32 %v1338, %v1462
        %v1464 = vpop.f32.mrb[0].mxu0
        %v1465 = vpop.f32.mrb[0].mxu0
        %v1466 = vadd.f32 %v1338, %v1465
        %v1467 = vpop.f32.mrb[0].mxu0
        %1468 = vmatprep.mubr.bf16.mxu0 0
        %1469 = vmatmul.mubr.bf16.gmra.mrb[0].mxu0 %v1307
        %v1470 = vpop.f32.mrb[0].mxu0
        %v1471 = vadd.f32 %v1338, %v1470
        %v1472 = vpop.f32.mrb[0].mxu0
        %v1473 = vpop.f32.mrb[0].mxu0
        %v1474 = vadd.f32 %v1338, %v1473
        %v1475 = vpop.f32.mrb[0].mxu0
        %1476 = vmatprep.mubr.bf16.mxu0 0
        %1477 = vmatmul.mubr.bf16.gmra.mrb[0].mxu0 %v1308
        %v1478 = vpop.f32.mrb[0].mxu0
        %v1479 = vadd.f32 %v1338, %v1478
        %v1480 = vpop.f32.mrb[0].mxu0
        %v1481 = vpop.f32.mrb[0].mxu0
        %v1482 = vadd.f32 %v1338, %v1481
        %v1483 = vpop.f32.mrb[0].mxu0
        %1484 = vmatprep.mubr.bf16.mxu0 0
        %1485 = vmatmul.mubr.bf16.gmra.mrb[0].mxu0 %v1309
        %v1486 = vpop.f32.mrb[0].mxu0
        %v1487 = vadd.f32 %v1338, %v1486
        %v1488 = vpop.f32.mrb[0].mxu0
        %v1489 = vpop.f32.mrb[0].mxu0
        %v1490 = vadd.f32 %v1338, %v1489
        %v1491 = vpop.f32.mrb[0].mxu0
        %1492 = vmatprep.mubr.bf16.mxu0 0
        %1493 = vmatmul.mubr.bf16.gmra.mrb[0].mxu0 %v1310
        %v1494 = vpop.f32.mrb[0].mxu0
        %v1495 = vadd.f32 %v1338, %v1494
        %v1496 = vpop.f32.mrb[0].mxu0
        %v1497 = vpop.f32.mrb[0].mxu0
        %v1498 = vadd.f32 %v1338, %v1497
        %v1499 = vpop.f32.mrb[0].mxu0
        %1500 = vmatprep.mubr.bf16.mxu0 0
        %1501 = vmatmul.mubr.bf16.gmra.mrb[0].mxu0 %v1311
        %v1502 = vpop.f32.mrb[0].mxu0
        %v1503 = vadd.f32 %v1338, %v1502
        %v1504 = vpop.f32.mrb[0].mxu0
        %v1505 = vpop.f32.mrb[0].mxu0
        %v1506 = vadd.f32 %v1338, %v1505
        %v1507 = vpop.f32.mrb[0].mxu0
        %1508 = vmatprep.mubr.bf16.mxu0 0
        %1509 = vmatmul.mubr.bf16.gmra.mrb[0].mxu0 %v1312
        %v1510 = vpop.f32.mrb[0].mxu0
        %v1511 = vadd.f32 %v1338, %v1510
        %v1512 = vpop.f32.mrb[0].mxu0
        %v1513 = vpop.f32.mrb[0].mxu0
        %v1514 = vadd.f32 %v1338, %v1513
        %v1515 = vpop.f32.mrb[0].mxu0
        %1516 = vmatprep.mubr.bf16.mxu0 0
        %1517 = vmatmul.mubr.bf16.gmra.mrb[0].mxu0 %v1313
        %v1518 = vpop.f32.mrb[0].mxu0
        %v1519 = vadd.f32 %v1338, %v1518
        %v1520 = vpop.f32.mrb[0].mxu0
        %v1521 = vpop.f32.mrb[0].mxu0
        %v1522 = vadd.f32 %v1338, %v1521
        %v1523 = vpop.f32.mrb[0].mxu0
        %1524 = vmatprep.mubr.bf16.mxu0 0
        %1525 = vmatmul.mubr.bf16.gmra.mrb[0].mxu0 %v1314
        %v1526 = vpop.f32.mrb[0].mxu0
        %v1527 = vadd.f32 %v1338, %v1526
        %v1528 = vpop.f32.mrb[0].mxu0
        %v1529 = vpop.f32.mrb[0].mxu0
        %v1530 = vadd.f32 %v1338, %v1529
        %v1531 = vpop.f32.mrb[0].mxu0
        %1532 = vmatprep.mubr.bf16.mxu0 0
        %1533 = vmatmul.mubr.bf16.gmra.mrb[0].mxu0 %v1315
        %v1534 = vpop.f32.mrb[0].mxu0
        %v1535 = vadd.f32 %v1338, %v1534
        %v1536 = vpop.f32.mrb[0].mxu0
        %v1537 = vpop.f32.mrb[0].mxu0
        %v1538 = vadd.f32 %v1338, %v1537
        %v1539 = vpop.f32.mrb[0].mxu0
        %1540 = vmatprep.mubr.bf16.mxu0 0
        %1541 = vmatmul.mubr.bf16.gmra.mrb[0].mxu0 %v1316
        %v1542 = vpop.f32.mrb[0].mxu0
        %v1543 = vadd.f32 %v1338, %v1542
        %v1544 = vpop.f32.mrb[0].mxu0
        %v1545 = vpop.f32.mrb[0].mxu0
        %v1546 = vadd.f32 %v1338, %v1545
        %v1547 = vpop.f32.mrb[0].mxu0
        %1548 = vdwg.mxu0
        %v1549 = vld [vmem:[#allocation8] sm:$0xff]
        %v1550 = vld [vmem:[#allocation8 + $0x8] sm:$0xff]
        %v1551 = vld [vmem:[#allocation8 + $0x10] sm:$0xff]
        %v1552 = vld [vmem:[#allocation8 + $0x18] sm:$0xff]
        %v1553 = vld [vmem:[#allocation8 + $0x20] sm:$0xff]
        %v1554 = vld [vmem:[#allocation8 + $0x28] sm:$0xff]
        %v1555 = vld [vmem:[#allocation8 + $0x30] sm:$0xff]
        %v1556 = vld [vmem:[#allocation8 + $0x38] sm:$0xff]
        %v1557 = vld [vmem:[#allocation8 + $0x40] sm:$0xff]
        %v1558 = vld [vmem:[#allocation8 + $0x48] sm:$0xff]
        %v1559 = vld [vmem:[#allocation8 + $0x50] sm:$0xff]
        %v1560 = vld [vmem:[#allocation8 + $0x58] sm:$0xff]
        %v1561 = vld [vmem:[#allocation8 + $0x60] sm:$0xff]
        %v1562 = vld [vmem:[#allocation8 + $0x68] sm:$0xff]
        %v1563 = vld [vmem:[#allocation8 + $0x70] sm:$0xff]
        %v1564 = vld [vmem:[#allocation8 + $0x78] sm:$0xff]
        %1565 = vmatprep.subr.mxu0 0.0
        %1566 = vmatpush1.msra.mxu0 %v1423
        %1567 = vmatprep.subr.mxu0 0.0
        %1568 = vmatpush1.msra.mxu0 %v1426
        %1569 = vmatprep.subr.mxu0 0.0
        %1570 = vmatpush1.msra.mxu0 %v1431
        %1571 = vmatprep.subr.mxu0 0.0
        %1572 = vmatpush1.msra.mxu0 %v1434
        %1573 = vmatprep.subr.mxu0 0.0
        %1574 = vmatpush1.msra.mxu0 %v1439
        %1575 = vmatprep.subr.mxu0 0.0
        %1576 = vmatpush1.msra.mxu0 %v1442
        %1577 = vmatprep.subr.mxu0 0.0
        %1578 = vmatpush1.msra.mxu0 %v1447
        %1579 = vmatprep.subr.mxu0 0.0
        %1580 = vmatpush1.msra.mxu0 %v1450
        %1581 = vmatprep.subr.mxu0 0.0
        %1582 = vmatpush1.msra.mxu0 %v1455
        %1583 = vmatprep.subr.mxu0 0.0
        %1584 = vmatpush1.msra.mxu0 %v1458
        %1585 = vmatprep.subr.mxu0 0.0
        %1586 = vmatpush1.msra.mxu0 %v1463
        %1587 = vmatprep.subr.mxu0 0.0
        %1588 = vmatpush1.msra.mxu0 %v1466
        %1589 = vmatprep.subr.mxu0 0.0
        %1590 = vmatpush1.msra.mxu0 %v1471
        %1591 = vmatprep.subr.mxu0 0.0
        %1592 = vmatpush1.msra.mxu0 %v1474
        %1593 = vmatprep.subr.mxu0 0.0
        %1594 = vmatpush1.msra.mxu0 %v1479
        %1595 = vmatprep.subr.mxu0 0.0
        %1596 = vmatpush1.msra.mxu0 %v1482
        %1597 = vmatprep.subr.mxu0 0.0
        %1598 = vmatpush1.msra.mxu0 %v1487
        %1599 = vmatprep.subr.mxu0 0.0
        %1600 = vmatpush1.msra.mxu0 %v1490
        %1601 = vmatprep.subr.mxu0 0.0
        %1602 = vmatpush1.msra.mxu0 %v1495
        %1603 = vmatprep.subr.mxu0 0.0
        %1604 = vmatpush1.msra.mxu0 %v1498
        %1605 = vmatprep.subr.mxu0 0.0
        %1606 = vmatpush1.msra.mxu0 %v1503
        %1607 = vmatprep.subr.mxu0 0.0
        %1608 = vmatpush1.msra.mxu0 %v1506
        %1609 = vmatprep.subr.mxu0 0.0
        %1610 = vmatpush1.msra.mxu0 %v1511
        %1611 = vmatprep.subr.mxu0 0.0
        %1612 = vmatpush1.msra.mxu0 %v1514
        %1613 = vmatprep.subr.mxu0 0.0
        %1614 = vmatpush1.msra.mxu0 %v1519
        %1615 = vmatprep.subr.mxu0 0.0
        %1616 = vmatpush1.msra.mxu0 %v1522
        %1617 = vmatprep.subr.mxu0 0.0
        %1618 = vmatpush1.msra.mxu0 %v1527
        %1619 = vmatprep.subr.mxu0 0.0
        %1620 = vmatpush1.msra.mxu0 %v1530
        %1621 = vmatprep.subr.mxu0 0.0
        %1622 = vmatpush1.msra.mxu0 %v1535
        %1623 = vmatprep.subr.mxu0 0.0
        %1624 = vmatpush1.msra.mxu0 %v1538
        %1625 = vmatprep.subr.mxu0 0.0
        %1626 = vmatpush1.msra.mxu0 %v1543
        %1627 = vmatprep.subr.mxu0 0.0
        %1628 = vmatpush1.msra.mxu0 %v1546
        %1629 = vmatprep.mubr.f32.mxu0 %v1550
        %1630 = vmatmul.mubr.f32.gmra.mrb[0].mxu0 %v1549
        %v1631 = vpop.f32.mrb[0].mxu0
        %v1632 = vadd.f32 0.0, %v1631
        %v1633 = vpop.f32.mrb[0].mxu0
        %1634 = vmatprep.mubr.f32.mxu0 %v1552
        %1635 = vmatmul.mubr.f32.gmra.mrb[0].mxu0 %v1551
        %v1636 = vpop.f32.mrb[0].mxu0
        %v1637 = vadd.f32 0.0, %v1636
        %v1638 = vpop.f32.mrb[0].mxu0
        %1639 = vmatprep.mubr.f32.mxu0 %v1554
        %1640 = vmatmul.mubr.f32.gmra.mrb[0].mxu0 %v1553
        %v1641 = vpop.f32.mrb[0].mxu0
        %v1642 = vadd.f32 0.0, %v1641
        %v1643 = vpop.f32.mrb[0].mxu0
        %1644 = vmatprep.mubr.f32.mxu0 %v1556
        %1645 = vmatmul.mubr.f32.gmra.mrb[0].mxu0 %v1555
        %v1646 = vpop.f32.mrb[0].mxu0
        %v1647 = vadd.f32 0.0, %v1646
        %v1648 = vpop.f32.mrb[0].mxu0
        %1649 = vmatprep.mubr.f32.mxu0 %v1558
        %1650 = vmatmul.mubr.f32.gmra.mrb[0].mxu0 %v1557
        %v1651 = vpop.f32.mrb[0].mxu0
        %v1652 = vadd.f32 0.0, %v1651
        %v1653 = vpop.f32.mrb[0].mxu0
        %1654 = vmatprep.mubr.f32.mxu0 %v1560
        %1655 = vmatmul.mubr.f32.gmra.mrb[0].mxu0 %v1559
        %v1656 = vpop.f32.mrb[0].mxu0
        %v1657 = vadd.f32 0.0, %v1656
        %v1658 = vpop.f32.mrb[0].mxu0
        %1659 = vmatprep.mubr.f32.mxu0 %v1562
        %1660 = vmatmul.mubr.f32.gmra.mrb[0].mxu0 %v1561
        %v1661 = vpop.f32.mrb[0].mxu0
        %v1662 = vadd.f32 0.0, %v1661
        %v1663 = vpop.f32.mrb[0].mxu0
        %1664 = vmatprep.mubr.f32.mxu0 %v1564
        %1665 = vmatmul.mubr.f32.gmra.mrb[0].mxu0 %v1563
        %v1666 = vpop.f32.mrb[0].mxu0
        %v1667 = vadd.f32 0.0, %v1666
        %v1668 = vpop.f32.mrb[0].mxu0
        %1669 = vdwg.mxu0
        %v1670 = vld [vmem:[#allocation10] sm:$0xff]
        %v1671 = vld [vmem:[#allocation10 + $0x8] sm:$0xff]
        %v1672 = vld [vmem:[#allocation10 + $0x10] sm:$0xff]
        %v1673 = vld [vmem:[#allocation10 + $0x18] sm:$0xff]
        %1674 = vmatprep.subr.mxu0 0.0
        %1675 = vmatpush1.msra.mxu0 %v1423
        %1676 = vmatprep.subr.mxu0 0.0
        %1677 = vmatpush1.msra.mxu0 %v1426
        %1678 = vmatprep.subr.mxu0 0.0
        %1679 = vmatpush1.msra.mxu0 %v1431
        %1680 = vmatprep.subr.mxu0 0.0
        %1681 = vmatpush1.msra.mxu0 %v1434
        %1682 = vmatprep.subr.mxu0 0.0
        %1683 = vmatpush1.msra.mxu0 %v1439
        %1684 = vmatprep.subr.mxu0 0.0
        %1685 = vmatpush1.msra.mxu0 %v1442
        %1686 = vmatprep.subr.mxu0 0.0
        %1687 = vmatpush1.msra.mxu0 %v1447
        %1688 = vmatprep.subr.mxu0 0.0
        %1689 = vmatpush1.msra.mxu0 %v1450
        %1690 = vmatprep.subr.mxu0 0.0
        %1691 = vmatpush1.msra.mxu0 %v1455
        %1692 = vmatprep.subr.mxu0 0.0
        %1693 = vmatpush1.msra.mxu0 %v1458
        %1694 = vmatprep.subr.mxu0 0.0
        %1695 = vmatpush1.msra.mxu0 %v1463
        %1696 = vmatprep.subr.mxu0 0.0
        %1697 = vmatpush1.msra.mxu0 %v1466
        %1698 = vmatprep.subr.mxu0 0.0
        %1699 = vmatpush1.msra.mxu0 %v1471
        %1700 = vmatprep.subr.mxu0 0.0
        %1701 = vmatpush1.msra.mxu0 %v1474
        %1702 = vmatprep.subr.mxu0 0.0
        %1703 = vmatpush1.msra.mxu0 %v1479
        %1704 = vmatprep.subr.mxu0 0.0
        %1705 = vmatpush1.msra.mxu0 %v1482
        %1706 = vmatprep.subr.mxu0 0.0
        %1707 = vmatpush1.msra.mxu0 %v1487
        %1708 = vmatprep.subr.mxu0 0.0
        %1709 = vmatpush1.msra.mxu0 %v1490
        %1710 = vmatprep.subr.mxu0 0.0
        %1711 = vmatpush1.msra.mxu0 %v1495
        %1712 = vmatprep.subr.mxu0 0.0
        %1713 = vmatpush1.msra.mxu0 %v1498
        %1714 = vmatprep.subr.mxu0 0.0
        %1715 = vmatpush1.msra.mxu0 %v1503
        %1716 = vmatprep.subr.mxu0 0.0
        %1717 = vmatpush1.msra.mxu0 %v1506
        %1718 = vmatprep.subr.mxu0 0.0
        %1719 = vmatpush1.msra.mxu0 %v1511
        %1720 = vmatprep.subr.mxu0 0.0
        %1721 = vmatpush1.msra.mxu0 %v1514
        %1722 = vmatprep.subr.mxu0 0.0
        %1723 = vmatpush1.msra.mxu0 %v1519
        %1724 = vmatprep.subr.mxu0 0.0
        %1725 = vmatpush1.msra.mxu0 %v1522
        %1726 = vmatprep.subr.mxu0 0.0
        %1727 = vmatpush1.msra.mxu0 %v1527
        %1728 = vmatprep.subr.mxu0 0.0
        %1729 = vmatpush1.msra.mxu0 %v1530
        %1730 = vmatprep.subr.mxu0 0.0
        %1731 = vmatpush1.msra.mxu0 %v1535
        %1732 = vmatprep.subr.mxu0 0.0
        %1733 = vmatpush1.msra.mxu0 %v1538
        %1734 = vmatprep.subr.mxu0 0.0
        %1735 = vmatpush1.msra.mxu0 %v1543
        %1736 = vmatprep.subr.mxu0 0.0
        %1737 = vmatpush1.msra.mxu0 %v1546
        %1738 = vmatprep.mubr.f32.mxu0 %v1671
        %1739 = vmatmul.mubr.f32.gmra.mrb[0].mxu0 %v1670
        %v1740 = vpop.f32.mrb[0].mxu0
        %v1741 = vadd.f32 0.0, %v1740
        %v1742 = vpop.f32.mrb[0].mxu0
        %1743 = vmatprep.mubr.f32.mxu0 %v1673
        %1744 = vmatmul.mubr.f32.gmra.mrb[0].mxu0 %v1672
        %v1745 = vpop.f32.mrb[0].mxu0
        %v1746 = vadd.f32 0.0, %v1745
        %v1747 = vpop.f32.mrb[0].mxu0
        %1748 = vdwg.mxu0
        %v1749 = vlaneseq
        %v1750 = vand.u32 %v1749, 127
        %vm1751 = vcmp.ge.s32.totalorder %v1750, 2
        %vm1752 = vcmp.lt.s32.totalorder %v1750, 6
        %vm1753 = vmand %vm1751, %vm1752
        %v1754 = vmul.f32 %v1423, 1.442695
        %v1755 = vpow.pop %v1754
        %v1756 = vmul.f32 %v1426, 1.442695
        %v1757 = vpow.pop %v1756
        %v1758 = vmul.f32 %v1431, 1.442695
        %v1759 = vpow.pop %v1758
        %v1760 = vmul.f32 %v1434, 1.442695
        %v1761 = vpow.pop %v1760
        %v1762 = vmul.f32 %v1439, 1.442695
        %v1763 = vpow.pop %v1762
        %v1764 = vmul.f32 %v1442, 1.442695
        %v1765 = vpow.pop %v1764
        %v1766 = vmul.f32 %v1447, 1.442695
        %v1767 = vpow.pop %v1766
        %v1768 = vmul.f32 %v1450, 1.442695
        %v1769 = vpow.pop %v1768
        %v1770 = vmul.f32 %v1455, 1.442695
        %v1771 = vpow.pop %v1770
        %v1772 = vmul.f32 %v1458, 1.442695
        %v1773 = vpow.pop %v1772
        %v1774 = vmul.f32 %v1463, 1.442695
        %v1775 = vpow.pop %v1774
        %v1776 = vmul.f32 %v1466, 1.442695
        %v1777 = vpow.pop %v1776
        %v1778 = vmul.f32 %v1471, 1.442695
        %v1779 = vpow.pop %v1778
        %v1780 = vmul.f32 %v1474, 1.442695
        %v1781 = vpow.pop %v1780
        %v1782 = vmul.f32 %v1479, 1.442695
        %v1783 = vpow.pop %v1782
        %v1784 = vmul.f32 %v1482, 1.442695
        %v1785 = vpow.pop %v1784
        %v1786 = vmul.f32 %v1487, 1.442695
        %v1787 = vpow.pop %v1786
        %v1788 = vmul.f32 %v1490, 1.442695
        %v1789 = vpow.pop %v1788
        %v1790 = vmul.f32 %v1495, 1.442695
        %v1791 = vpow.pop %v1790
        %v1792 = vmul.f32 %v1498, 1.442695
        %v1793 = vpow.pop %v1792
        %v1794 = vmul.f32 %v1503, 1.442695
        %v1795 = vpow.pop %v1794
        %v1796 = vmul.f32 %v1506, 1.442695
        %v1797 = vpow.pop %v1796
        %v1798 = vmul.f32 %v1511, 1.442695
        %v1799 = vpow.pop %v1798
        %v1800 = vmul.f32 %v1514, 1.442695
        %v1801 = vpow.pop %v1800
        %v1802 = vmul.f32 %v1519, 1.442695
        %v1803 = vpow.pop %v1802
        %v1804 = vmul.f32 %v1522, 1.442695
        %v1805 = vpow.pop %v1804
        %v1806 = vmul.f32 %v1527, 1.442695
        %v1807 = vpow.pop %v1806
        %v1808 = vmul.f32 %v1530, 1.442695
        %v1809 = vpow.pop %v1808
        %v1810 = vmul.f32 %v1535, 1.442695
        %v1811 = vpow.pop %v1810
        %v1812 = vmul.f32 %v1538, 1.442695
        %v1813 = vpow.pop %v1812
        %v1814 = vmul.f32 %v1543, 1.442695
        %v1815 = vpow.pop %v1814
        %v1816 = vmul.f32 %v1546, 1.442695
        %v1817 = vpow.pop %v1816
        %v1818 = vmul.f32 %v1755, 14.0
        %v1819 = vmul.f32 %v1757, 14.0
        %v1820 = vmul.f32 %v1759, 14.0
        %v1821 = vmul.f32 %v1761, 14.0
        %v1822 = vmul.f32 %v1763, 14.0
        %v1823 = vmul.f32 %v1765, 14.0
        %v1824 = vmul.f32 %v1767, 14.0
        %v1825 = vmul.f32 %v1769, 14.0
        %v1826 = vmul.f32 %v1771, 14.0
        %v1827 = vmul.f32 %v1773, 14.0
        %v1828 = vmul.f32 %v1775, 14.0
        %v1829 = vmul.f32 %v1777, 14.0
        %v1830 = vmul.f32 %v1779, 14.0
        %v1831 = vmul.f32 %v1781, 14.0
        %v1832 = vmul.f32 %v1783, 14.0
        %v1833 = vmul.f32 %v1785, 14.0
        %v1834 = vmul.f32 %v1787, 14.0
        %v1835 = vmul.f32 %v1789, 14.0
        %v1836 = vmul.f32 %v1791, 14.0
        %v1837 = vmul.f32 %v1793, 14.0
        %v1838 = vmul.f32 %v1795, 14.0
        %v1839 = vmul.f32 %v1797, 14.0
        %v1840 = vmul.f32 %v1799, 14.0
        %v1841 = vmul.f32 %v1801, 14.0
        %v1842 = vmul.f32 %v1803, 14.0
        %v1843 = vmul.f32 %v1805, 14.0
        %v1844 = vmul.f32 %v1807, 14.0
        %v1845 = vmul.f32 %v1809, 14.0
        %v1846 = vmul.f32 %v1811, 14.0
        %v1847 = vmul.f32 %v1813, 14.0
        %v1848 = vmul.f32 %v1815, 14.0
        %v1849 = vmul.f32 %v1817, 14.0
        %v1850 = vsel %vm1753, 1, 0
        %vm1851 = vcmp.eq.s32.totalorder %v1850, 1
        %v1852 = vsel %vm1851, %v1818, %v1423
        %v1853 = vsel %vm1851, %v1819, %v1426
        %v1854 = vsel %vm1851, %v1820, %v1431
        %v1855 = vsel %vm1851, %v1821, %v1434
        %v1856 = vsel %vm1851, %v1822, %v1439
        %v1857 = vsel %vm1851, %v1823, %v1442
        %v1858 = vsel %vm1851, %v1824, %v1447
        %v1859 = vsel %vm1851, %v1825, %v1450
        %v1860 = vsel %vm1851, %v1826, %v1455
        %v1861 = vsel %vm1851, %v1827, %v1458
        %v1862 = vsel %vm1851, %v1828, %v1463
        %v1863 = vsel %vm1851, %v1829, %v1466
        %v1864 = vsel %vm1851, %v1830, %v1471
        %v1865 = vsel %vm1851, %v1831, %v1474
        %v1866 = vsel %vm1851, %v1832, %v1479
        %v1867 = vsel %vm1851, %v1833, %v1482
        %v1868 = vsel %vm1851, %v1834, %v1487
        %v1869 = vsel %vm1851, %v1835, %v1490
        %v1870 = vsel %vm1851, %v1836, %v1495
        %v1871 = vsel %vm1851, %v1837, %v1498
        %v1872 = vsel %vm1851, %v1838, %v1503
        %v1873 = vsel %vm1851, %v1839, %v1506
        %v1874 = vsel %vm1851, %v1840, %v1511
        %v1875 = vsel %vm1851, %v1841, %v1514
        %v1876 = vsel %vm1851, %v1842, %v1519
        %v1877 = vsel %vm1851, %v1843, %v1522
        %v1878 = vsel %vm1851, %v1844, %v1527
        %v1879 = vsel %vm1851, %v1845, %v1530
        %v1880 = vsel %vm1851, %v1846, %v1535
        %v1881 = vsel %vm1851, %v1847, %v1538
        %v1882 = vsel %vm1851, %v1848, %v1543
        %v1883 = vsel %vm1851, %v1849, %v1546
        %1884 = vst [vmem:[%s412] sm:$0xff] %v1852
        %1885 = vst [vmem:[%s412 + $0x8] sm:$0xff] %v1853
        %1886 = vst [vmem:[%s412 + $0x10] sm:$0xff] %v1854
        %1887 = vst [vmem:[%s412 + $0x18] sm:$0xff] %v1855
        %1888 = vst [vmem:[%s412 + $0x20] sm:$0xff] %v1856
        %1889 = vst [vmem:[%s412 + $0x28] sm:$0xff] %v1857
        %1890 = vst [vmem:[%s412 + $0x30] sm:$0xff] %v1858
        %1891 = vst [vmem:[%s412 + $0x38] sm:$0xff] %v1859
        %1892 = vst [vmem:[%s412 + $0x40] sm:$0xff] %v1860
        %1893 = vst [vmem:[%s412 + $0x48] sm:$0xff] %v1861
        %1894 = vst [vmem:[%s412 + $0x50] sm:$0xff] %v1862
        %1895 = vst [vmem:[%s412 + $0x58] sm:$0xff] %v1863
        %1896 = vst [vmem:[%s412 + $0x60] sm:$0xff] %v1864
        %1897 = vst [vmem:[%s412 + $0x68] sm:$0xff] %v1865
        %1898 = vst [vmem:[%s412 + $0x70] sm:$0xff] %v1866
        %1899 = vst [vmem:[%s412 + $0x78] sm:$0xff] %v1867
        %1900 = vst [vmem:[%s412 + $0x80] sm:$0xff] %v1868
        %1901 = vst [vmem:[%s412 + $0x88] sm:$0xff] %v1869
        %1902 = vst [vmem:[%s412 + $0x90] sm:$0xff] %v1870
        %1903 = vst [vmem:[%s412 + $0x98] sm:$0xff] %v1871
        %1904 = vst [vmem:[%s412 + $0xa0] sm:$0xff] %v1872
        %1905 = vst [vmem:[%s412 + $0xa8] sm:$0xff] %v1873
        %1906 = vst [vmem:[%s412 + $0xb0] sm:$0xff] %v1874
        %1907 = vst [vmem:[%s412 + $0xb8] sm:$0xff] %v1875
        %1908 = vst [vmem:[%s412 + $0xc0] sm:$0xff] %v1876
        %1909 = vst [vmem:[%s412 + $0xc8] sm:$0xff] %v1877
        %1910 = vst [vmem:[%s412 + $0xd0] sm:$0xff] %v1878
        %1911 = vst [vmem:[%s412 + $0xd8] sm:$0xff] %v1879
        %1912 = vst [vmem:[%s412 + $0xe0] sm:$0xff] %v1880
        %1913 = vst [vmem:[%s412 + $0xe8] sm:$0xff] %v1881
        %1914 = vst [vmem:[%s412 + $0xf0] sm:$0xff] %v1882
        %1915 = vst [vmem:[%s412 + $0xf8] sm:$0xff] %v1883
        %v1916 = vmul.f32 %v1632, 1.442695
        %v1917 = vpow.pop %v1916
        %v1918 = vmul.f32 %v1637, 1.442695
        %v1919 = vpow.pop %v1918
        %v1920 = vmul.f32 %v1642, 1.442695
        %v1921 = vpow.pop %v1920
        %v1922 = vmul.f32 %v1647, 1.442695
        %v1923 = vpow.pop %v1922
        %v1924 = vmul.f32 %v1652, 1.442695
        %v1925 = vpow.pop %v1924
        %v1926 = vmul.f32 %v1657, 1.442695
        %v1927 = vpow.pop %v1926
        %v1928 = vmul.f32 %v1662, 1.442695
        %v1929 = vpow.pop %v1928
        %v1930 = vmul.f32 %v1667, 1.442695
        %v1931 = vpow.pop %v1930
        %v1932 = vmul.f32 %v1917, 28.0
        %v1933 = vmul.f32 %v1919, 28.0
        %v1934 = vmul.f32 %v1921, 28.0
        %v1935 = vmul.f32 %v1923, 28.0
        %v1936 = vmul.f32 %v1925, 28.0
        %v1937 = vmul.f32 %v1927, 28.0
        %v1938 = vmul.f32 %v1929, 28.0
        %v1939 = vmul.f32 %v1931, 28.0
        %v1940 = vsel %vm1851, %v1932, %v1632
        %v1941 = vsel %vm1851, %v1933, %v1637
        %v1942 = vsel %vm1851, %v1934, %v1642
        %v1943 = vsel %vm1851, %v1935, %v1647
        %v1944 = vsel %vm1851, %v1936, %v1652
        %v1945 = vsel %vm1851, %v1937, %v1657
        %v1946 = vsel %vm1851, %v1938, %v1662
        %v1947 = vsel %vm1851, %v1939, %v1667
        %1948 = vst [vmem:[%s419] sm:$0xff] %v1940
        %1949 = vst [vmem:[%s419 + $0x8] sm:$0xff] %v1941
        %1950 = vst [vmem:[%s419 + $0x10] sm:$0xff] %v1942
        %1951 = vst [vmem:[%s419 + $0x18] sm:$0xff] %v1943
        %1952 = vst [vmem:[%s419 + $0x20] sm:$0xff] %v1944
        %1953 = vst [vmem:[%s419 + $0x28] sm:$0xff] %v1945
        %1954 = vst [vmem:[%s419 + $0x30] sm:$0xff] %v1946
        %1955 = vst [vmem:[%s419 + $0x38] sm:$0xff] %v1947
        %v1956 = vmul.f32 %v1741, 1.442695
        %v1957 = vpow.pop %v1956
        %v1958 = vmul.f32 %v1746, 1.442695
        %v1959 = vpow.pop %v1958
        %v1960 = vmul.f32 %v1957, 56.0
        %v1961 = vmul.f32 %v1959, 56.0
        %v1962 = vsel %vm1851, %v1960, %v1741
        %v1963 = vsel %vm1851, %v1961, %v1746
        %1964 = vst [vmem:[%s426] sm:$0xff] %v1962
        %1965 = vst [vmem:[%s426 + $0x8] sm:$0xff] %v1963
        %s1966 = sand.u32 %s192, 1
        %s1967 = scalar_lea.sflag [#allocation4], %s1966
        %s1968 = sand.u32 %s192, 1
        %s1969 = smul.addr %s1968, 256
        %s1970 = scalar_lea.vmem [#allocation11], %s1969
        %s1971 = sand.u32 %s32, 1
        %s1972 = scalar_lea.sflag [#allocation13], %s1971
        %s1973 = sand.u32 %s218, 1
        %s1974 = smul.addr %s1973, 64
        %s1975 = scalar_lea.vmem [#allocation12], %s1974
        %s1976 = sand.u32 %s32, 1
        %s1977 = scalar_lea.sflag [#allocation13], %s1976
        %s1978 = sand.u32 %s244, 1
        %s1979 = smul.addr %s1978, 16
        %s1980 = scalar_lea.vmem [#allocation14], %s1979
        // Predicated region
        $region69: #{tpu_custom_call.1} parent=47 // pred_check
          %p1981 = pneg %p202
        $region70: #{tpu_custom_call.1} parent=47 // pred_check_branch
          %1983 = sbr.rel (%p1981) target = $region72
        $region71: #{tpu_custom_call.1} parent=47 // pred_region
          %s1985 = ssub.s32 4096, 4096
          %1986 = vsyncadd %s1967, %s1985
          %s1987 = smul.addr %s32, 32
          %s1988 = smul.addr %s1987, 128
          %s1989 = scalar_lea.hbm %s7, %s1988
          %s1990 = sshll.u32 %s1970, 4
          %s1991 = int_to_ptr.vmem [resolvable:$true] %s1990
          %1996 = dma.vmem_to_hbm [thread:$0]  %s1991, 4096, %s1989, %s1967, 128, 128, 8
        $region72: #{tpu_custom_call.1} parent=47 // pred_fallthru
          _
        // Predicated region
        $region73: #{tpu_custom_call.1} parent=47 // pred_check
          %p1997 = pneg %p228
        $region74: #{tpu_custom_call.1} parent=47 // pred_check_branch
          %1999 = sbr.rel (%p1997) target = $region76
        $region75: #{tpu_custom_call.1} parent=47 // pred_region
          %s2001 = ssub.s32 1024, 1024
          %2002 = vsyncadd %s1972, %s2001
          %s2003 = smul.addr %s32, 8
          %s2004 = smul.addr %s2003, 128
          %s2005 = scalar_lea.hbm %s8, %s2004
          %s2006 = sshll.u32 %s1975, 4
          %s2007 = int_to_ptr.vmem [resolvable:$true] %s2006
          %2012 = dma.vmem_to_hbm [thread:$0]  %s2007, 1024, %s2005, %s1972, 128, 128, 8
        $region76: #{tpu_custom_call.1} parent=47 // pred_fallthru
          _
        // Predicated region
        $region77: #{tpu_custom_call.1} parent=47 // pred_check
          %p2013 = pneg %p254
        $region78: #{tpu_custom_call.1} parent=47 // pred_check_branch
          %2015 = sbr.rel (%p2013) target = $region80
        $region79: #{tpu_custom_call.1} parent=47 // pred_region
          %s2017 = ssub.s32 256, 256
          %2018 = vsyncadd %s1977, %s2017
          %s2019 = smul.addr %s32, 2
          %s2020 = smul.addr %s2019, 128
          %s2021 = scalar_lea.hbm %s9, %s2020
          %s2022 = sshll.u32 %s1980, 4
          %s2023 = int_to_ptr.vmem [resolvable:$true] %s2022
          %2028 = dma.vmem_to_hbm [thread:$0]  %s2023, 256, %s2021, %s1977, 128, 128, 8
        $region80: #{tpu_custom_call.1} parent=47 // pred_fallthru
          _
      $region48: #{tpu_custom_call.1} parent=5 // pred_fallthru
        _
      %p2029 = scmp.le.s32.totalorder 2, %s27
      // Predicated region
      $region81: #{tpu_custom_call.1} parent=5 // pred_check
        %p2030 = pneg %p2029
      $region82: #{tpu_custom_call.1} parent=5 // pred_check_branch
        %2032 = sbr.rel (%p2030) target = $region84
      $region83: #{tpu_custom_call.1} parent=5 // pred_region
        %s2033 = ssub.s32 %s27, 2
        // Predicated region
        $region85: #{tpu_custom_call.1} parent=83 // pred_check
          %p2034 = pneg %p208
        $region86: #{tpu_custom_call.1} parent=83 // pred_check_branch
          %2036 = sbr.rel (%p2034) target = $region88
        $region87: #{tpu_custom_call.1} parent=83 // pred_region
          %s2037 = sand.u32 %s193, 1
          %s2038 = scalar_lea.sflag [#allocation4], %s2037
          %s2039 = sand.u32 %s193, 1
          %s2040 = smul.addr %s2039, 256
          %s2041 = scalar_lea.vmem [#allocation11], %s2040
          %2042 = dma.done %s2038, 4096
        $region88: #{tpu_custom_call.1} parent=83 // pred_fallthru
          _
        // Predicated region
        $region89: #{tpu_custom_call.1} parent=83 // pred_check
          %p2043 = pneg %p234
        $region90: #{tpu_custom_call.1} parent=83 // pred_check_branch
          %2045 = sbr.rel (%p2043) target = $region92
        $region91: #{tpu_custom_call.1} parent=83 // pred_region
          %s2046 = sand.u32 %s33, 1
          %s2047 = scalar_lea.sflag [#allocation13], %s2046
          %s2048 = sand.u32 %s219, 1
          %s2049 = smul.addr %s2048, 64
          %s2050 = scalar_lea.vmem [#allocation12], %s2049
          %2051 = dma.done %s2047, 1024
        $region92: #{tpu_custom_call.1} parent=83 // pred_fallthru
          _
        // Predicated region
        $region93: #{tpu_custom_call.1} parent=83 // pred_check
          %p2052 = pneg %p260
        $region94: #{tpu_custom_call.1} parent=83 // pred_check_branch
          %2054 = sbr.rel (%p2052) target = $region96
        $region95: #{tpu_custom_call.1} parent=83 // pred_region
          %s2055 = sand.u32 %s33, 1
          %s2056 = scalar_lea.sflag [#allocation13], %s2055
          %s2057 = sand.u32 %s245, 1
          %s2058 = smul.addr %s2057, 16
          %s2059 = scalar_lea.vmem [#allocation14], %s2058
          %2060 = dma.done %s2056, 256
        $region96: #{tpu_custom_call.1} parent=83 // pred_fallthru
          _
      $region84: #{tpu_custom_call.1} parent=5 // pred_fallthru
        _
    $region6: #{tpu_custom_call.1} parent=1 // loop_footer
      %s31 = sadd.s32 1, %s27
    $region7: #{tpu_custom_call.1} parent=1 // loop_footer_branch
      %26 = sbr.rel target = $region3
    $region8: #{tpu_custom_call.1} parent=1 // loop_exit
      _
    %2061 = vsyncpa [#allocation3], 1
    %s2062 = scalar_lea.sflag [#allocation3], 1
    %2063 = vsyncpa %s2062, 1
    %2064 = vsyncpa [#allocation6], 1
    %2065 = vsyncpa [#allocation9], 1
    %2066 = vsyncpa [#allocation4], 1
    %s2067 = scalar_lea.sflag [#allocation4], 1
    %2068 = vsyncpa %s2067, 1
    %2069 = vsyncpa [#allocation13], 1
    %s2070 = scalar_lea.sflag [#allocation13], 1
    %2071 = vsyncpa %s2070, 1

</llo_original>
